<compile_context>
chip_gen: v6e
topology: v6e:2x2x1
jax: 0.10.0
libtpu: 0.0.40
codegen_flags: <defaults>
</compile_context>

<pallas_src>
import functools
import math

import jax
import jax.numpy as jnp
from jax.experimental import pallas as pl
from jax.experimental.pallas import tpu as pltpu

_LANE = 128
_SUBLANE = 8
_MXU_ROWS = 256
_INV_SQRT2 = 1.0 / math.sqrt(2.0)
_GELU_TANH_C = math.sqrt(2.0 / math.pi)


def _round_up(x, m):
    return ((x + m - 1) // m) * m


# ----------------------------------------------------------------------------
# Fused kernel: entire head for one batch tile
# ----------------------------------------------------------------------------
def _fused_head_kernel(*refs, num_layers, eps, hidden_dims, gelu_approximate):
    """refs layout:
      refs[0]                 : x tile                     (tb, D_in_pad)
      refs[1 + 2*l]           : layer-l weight             (K_pad, H_pad)  matmul dtype
      refs[2 + 2*l]           : layer-l [bias;gamma;beta]  (3, H_pad)      f32
      refs[1 + 2*num_layers]  : classifier weight          (K_pad, C_pad)  matmul dtype
      refs[2 + 2*num_layers]  : classifier bias            (1, C_pad)      f32
      refs[-1]                : output tile                (tb, C_pad)
    """
    x_ref = refs[0]
    o_ref = refs[-1]
    wc_ref = refs[1 + 2 * num_layers]
    bc_ref = refs[2 + 2 * num_layers]

    h = x_ref[...].astype(jnp.float32)

    for l in range(num_layers):
        w = refs[1 + 2 * l][...]                            # keep matmul dtype (bf16/f32)
        vec = refs[2 + 2 * l][...].astype(jnp.float32)      # (3, H_pad)
        bias, gamma, beta = vec[0:1, :], vec[1:2, :], vec[2:3, :]
        H = hidden_dims[l]

        # Linear on the MXU: native bf16 operands, f32 accumulate.  Padded
        # weight columns / bias entries are zero, so padded z columns stay 0.
        z = jnp.dot(h.astype(w.dtype), w, preferred_element_type=jnp.float32) + bias

        # LayerNorm over the *true* H columns (torch biased variance).
        # Padded columns of z are exactly zero, so sums over H_pad == sums
        # over H -> no iota/where mask, single-pass E[z^2]-mean^2 variance.
        inv_h = 1.0 / H
        mean = jnp.sum(z, axis=-1, keepdims=True) * inv_h
        var = jnp.sum(z * z, axis=-1, keepdims=True) * inv_h - mean * mean
        inv = jax.lax.rsqrt(jnp.maximum(var, 0.0) + eps)
        hn = (z - mean) * (inv * gamma) + beta   # pad cols: gamma=beta=0 -> stay 0

        if gelu_approximate:
            # tanh GELU: tanh goes to the otherwise-idle EUP slot.
            # NOTE: slight numerics deviation from torch's exact erf GELU.
            h = 0.5 * hn * (1.0 + jnp.tanh(_GELU_TANH_C * (hn + 0.044715 * hn * hn * hn)))
        else:
            # Exact GELU (torch.nn.GELU default, erf form). GELU(0)=0 keeps padding zero.
            h = 0.5 * hn * (1.0 + jax.lax.erf(hn * _INV_SQRT2))

        # Dropout is identity in eval mode.

    wc = wc_ref[...]
    bc = bc_ref[...].astype(jnp.float32)
    logits = jnp.dot(h.astype(wc.dtype), wc, preferred_element_type=jnp.float32) + bc
    o_ref[...] = logits.astype(o_ref.dtype)


# ----------------------------------------------------------------------------
# One-time parameter packing (hoisted out of the per-call hot path)
# ----------------------------------------------------------------------------
def pack_params(params, *, matmul_dtype=jnp.bfloat16, param_dtype=jnp.float32):
    layers = params["layers"]
    wc, bc = params["classifier"]
    d_in = layers[0][0].shape[0] if layers else wc.shape[0]

    dims = [d_in] + [w.shape[1] for (w, _, _, _) in layers]
    dims_pad = [_round_up(d, _LANE) for d in dims]
    num_classes = wc.shape[1]
    c_pad = _round_up(num_classes, _LANE)

    blocks = []
    hidden_true = []
    for li, (w, b, gamma, beta) in enumerate(layers):
        k, h = w.shape
        k_pad, h_pad = dims_pad[li], dims_pad[li + 1]
        wp = jnp.pad(w, ((0, k_pad - k), (0, h_pad - h))).astype(matmul_dtype)
        vecp = jnp.pad(jnp.stack([b, gamma, beta], axis=0),
                       ((0, 0), (0, h_pad - h))).astype(param_dtype)
        blocks += [wp, vecp]
        hidden_true.append(h)

    k, c = wc.shape
    wcp = jnp.pad(wc, ((0, dims_pad[-1] - k), (0, c_pad - c))).astype(matmul_dtype)
    bcp = jnp.pad(bc.reshape(1, -1), ((0, 0), (0, c_pad - c))).astype(param_dtype)
    blocks += [wcp, bcp]

    return {
        "blocks": tuple(blocks),
        "dims_pad": tuple(dims_pad),
        "hidden_true": tuple(hidden_true),
        "num_layers": len(layers),
        "input_dim": d_in,
        "num_classes": num_classes,
        "c_pad": c_pad,
    }


# ----------------------------------------------------------------------------
# Wrapper
# ----------------------------------------------------------------------------
def category_head_single_packed(packed, x, *, tb=512, eps=1e-5, gelu_approximate=False):
    B, d_in = x.shape
    assert d_in == packed["input_dim"], (d_in, packed["input_dim"])

    dims_pad = packed["dims_pad"]
    c_pad = packed["c_pad"]
    num_layers = packed["num_layers"]
    blocks = packed["blocks"]

    # ---- batch tiling -------------------------------------------------------
    b_ceil = _round_up(B, _SUBLANE)
    tb = max(_SUBLANE, min(_round_up(tb, _SUBLANE), b_ceil))
    # v7x has 2 TensorCores: give the "parallel" batch axis >= 2 grid steps
    # whenever the batch allows, so both cores get work.
    if b_ceil >= 2 * _SUBLANE:
        tb = min(tb, _round_up(pl.cdiv(b_ceil, 2), _SUBLANE))
    # Snap large tiles to the 256-row MXU granularity (v6e/v7x).
    if tb > _MXU_ROWS:
        tb = (tb // _MXU_ROWS) * _MXU_ROWS
    b_pad = _round_up(B, tb)
    grid = (b_pad // tb,)

    xp = x
    if b_pad != B or dims_pad[0] != d_in:
        xp = jnp.pad(x, ((0, b_pad - B), (0, dims_pad[0] - d_in)))

    # ---- VMEM budget (params single-buffered, I/O tiles double-buffered) ----
    param_bytes = sum(int(blk.size) * blk.dtype.itemsize for blk in blocks)
    io_bytes = 2 * tb * (dims_pad[0] + c_pad) * x.dtype.itemsize
    widest = max(max(dims_pad), c_pad)
    act_bytes = 6 * tb * widest * 4           # rough f32 intermediates (z, hn, temps)
    vmem_limit = int(min(max(param_bytes + io_bytes + act_bytes + (4 << 20), 16 << 20),
                         64 << 20))           # 64 MiB = v7x physical VMEM per TC

    # ---- advisory cost estimate ---------------------------------------------
    flops, trans = 0, 0
    prev = dims_pad[0]
    for li in range(num_layers):
        hp = dims_pad[li + 1]
        flops += 2 * b_pad * prev * hp + 10 * b_pad * hp
        trans += b_pad * hp + b_pad        # gelu + rsqrt
        prev = hp
    flops += 2 * b_pad * prev * c_pad
    bytes_accessed = (xp.size * xp.dtype.itemsize + b_pad * c_pad * x.dtype.itemsize
                      + param_bytes)

    kernel = functools.partial(_fused_head_kernel, num_layers=num_layers, eps=eps,
                               hidden_dims=packed["hidden_true"],
                               gelu_approximate=gelu_approximate)

    def _run(single_buffer_params):
        def const_spec(shape):
            if single_buffer_params:
                # Constant across the batch grid -> no point double-buffering.
                return pl.BlockSpec(shape, lambda i: (0, 0), pipeline_mode=pl.Buffered(1))
            return pl.BlockSpec(shape, lambda i: (0, 0))

        in_specs = [pl.BlockSpec((tb, dims_pad[0]), lambda i: (i, 0))]
        for li in range(num_layers):
            k_pad, h_pad = dims_pad[li], dims_pad[li + 1]
            in_specs += [const_spec((k_pad, h_pad)), const_spec((3, h_pad))]
        in_specs += [const_spec((dims_pad[-1], c_pad)), const_spec((1, c_pad))]
        out_spec = pl.BlockSpec((tb, c_pad), lambda i: (i, 0))

        return pl.pallas_call(
            kernel,
            out_shape=jax.ShapeDtypeStruct((b_pad, c_pad), x.dtype),
            grid=grid,
            in_specs=in_specs,
            out_specs=out_spec,
            compiler_params=pltpu.CompilerParams(
                dimension_semantics=("parallel",),
                vmem_limit_bytes=vmem_limit),
            cost_estimate=pl.CostEstimate(
                flops=int(flops), transcendentals=int(trans),
                bytes_accessed=int(bytes_accessed)),
        )(xp, *blocks)

    try:
        out = _run(single_buffer_params=True)
    except Exception:
        # Fallback for environments without BlockSpec.pipeline_mode support.
        out = _run(single_buffer_params=False)

    return out[:B, :packed["num_classes"]]


def category_head_single(params, x, *, matmul_dtype=jnp.bfloat16, **kw):
    """Convenience one-shot wrapper. For repeated calls, pack_params() once."""
    return category_head_single_packed(pack_params(params, matmul_dtype=matmul_dtype), x, **kw)


# ----------------------------------------------------------------------------
# Parameter init + pure-JAX reference
# ----------------------------------------------------------------------------
def init_category_head(key, input_dim, hidden_dims, num_classes, dtype=jnp.float32):
    """Deterministic synthetic init (Kaiming-uniform-ish like torch Linear)."""
    params = {"layers": [], "classifier": None}
    prev = input_dim
    for h in hidden_dims:
        key, kw, kb = jax.random.split(key, 3)
        bound = 1.0 / math.sqrt(prev)
        w = jax.random.uniform(kw, (prev, h), dtype, -bound, bound)   # stored [in, out]
        b = jax.random.uniform(kb, (h,), dtype, -bound, bound)
        params["layers"].append((w, b, jnp.ones((h,), dtype), jnp.zeros((h,), dtype)))
        prev = h
    key, kw, kb = jax.random.split(key, 3)
    bound = 1.0 / math.sqrt(prev)
    wc = jax.random.uniform(kw, (prev, num_classes), dtype, -bound, bound)
    bc = jax.random.uniform(kb, (num_classes,), dtype, -bound, bound)
    params["classifier"] = (wc, bc)
    return params


def category_head_single_ref(params, x, eps=1e-5):
    for (w, b, gamma, beta) in params["layers"]:
        h = x @ w + b
        mu = jnp.mean(h, axis=-1, keepdims=True)
        var = jnp.mean((h - mu) ** 2, axis=-1, keepdims=True)
        h = (h - mu) / jnp.sqrt(var + eps) * gamma + beta
        x = jax.nn.gelu(h, approximate=False)
    wc, bc = params["classifier"]
    return x @ wc + bc


# ----------------------------------------------------------------------------
if __name__ == "__main__":
    key = jax.random.PRNGKey(0)

    batch = 8
    input_dim = 32
    hidden_dims = (64, 32)
    num_classes = 16
    dropout = 0.1  # inference mode -> identity

    kp, kx = jax.random.split(key)
    params = init_category_head(kp, input_dim, hidden_dims, num_classes)
    x = jax.random.normal(kx, (batch, input_dim), jnp.float32)
    ref = category_head_single_ref(params, x)

    # 1) Exact path (f32 matmuls + erf GELU): matches torch semantics tightly.
    packed_f32 = pack_params(params, matmul_dtype=jnp.float32)
    out_exact = jax.block_until_ready(category_head_single_packed(packed_f32, x))
    assert out_exact.shape == (batch, num_classes), out_exact.shape
    err = float(jnp.max(jnp.abs(out_exact - ref)))
    assert jnp.allclose(out_exact, ref, atol=1e-4, rtol=1e-4), err

    # 2) Perf path (bf16 MXU operands + tanh GELU on the EUP): relaxed tolerance
    #    (numerics deviation flagged in the perf review).
    packed_bf16 = pack_params(params, matmul_dtype=jnp.bfloat16)
    out_fast = jax.block_until_ready(
        category_head_single_packed(packed_bf16, x, gelu_approximate=True))
    err_fast = float(jnp.max(jnp.abs(out_fast - ref)))
    assert jnp.allclose(out_fast, ref, atol=5e-2, rtol=5e-2), err_fast

    print("KERNEL_OK")
</pallas_src>

<mosaic_0001>
module attributes {stable_mosaic.version = 11 : i64} {
  func.func @_fused_head_kernel(%arg0: i32, %arg1: memref<8x128xf32, #tpu.memory_space<vmem>>, %arg2: memref<128x128xf32, #tpu.memory_space<vmem>>, %arg3: memref<3x128xf32, #tpu.memory_space<vmem>>, %arg4: memref<128x128xf32, #tpu.memory_space<vmem>>, %arg5: memref<3x128xf32, #tpu.memory_space<vmem>>, %arg6: memref<128x128xf32, #tpu.memory_space<vmem>>, %arg7: memref<1x128xf32, #tpu.memory_space<vmem>>, %arg8: memref<8x128xf32, #tpu.memory_space<vmem>>) attributes {dimension_semantics = [#tpu.dimension_semantics<parallel>], iteration_bounds = array<i64: 1>, scalar_prefetch = 0 : i64, scratch_operands = 0 : i64, tpu.core_type = #tpu.core_type<tc>, window_params = [{transform_indices = @transform_0, window_bounds = array<i64: 8, 128>}, {pipeline_mode = #tpu.pipeline_mode<synchronous>, transform_indices = @transform_1, window_bounds = array<i64: 128, 128>}, {pipeline_mode = #tpu.pipeline_mode<synchronous>, transform_indices = @transform_2, window_bounds = array<i64: 3, 128>}, {pipeline_mode = #tpu.pipeline_mode<synchronous>, transform_indices = @transform_3, window_bounds = array<i64: 128, 128>}, {pipeline_mode = #tpu.pipeline_mode<synchronous>, transform_indices = @transform_4, window_bounds = array<i64: 3, 128>}, {pipeline_mode = #tpu.pipeline_mode<synchronous>, transform_indices = @transform_5, window_bounds = array<i64: 128, 128>}, {pipeline_mode = #tpu.pipeline_mode<synchronous>, transform_indices = @transform_6, window_bounds = array<i64: 1, 128>}, {transform_indices = @transform_7, window_bounds = array<i64: 8, 128>}]} {
    %c0 = arith.constant 0 : index
    %c0_0 = arith.constant 0 : index
    %0 = vector.load %arg1[%c0, %c0_0] : memref<8x128xf32, #tpu.memory_space<vmem>>, vector<8x128xf32>
    %c0_1 = arith.constant 0 : index
    %c0_2 = arith.constant 0 : index
    %1 = vector.load %arg2[%c0_1, %c0_2] : memref<128x128xf32, #tpu.memory_space<vmem>>, vector<128x128xf32>
    %c0_3 = arith.constant 0 : index
    %c0_4 = arith.constant 0 : index
    %2 = vector.load %arg3[%c0_3, %c0_4] : memref<3x128xf32, #tpu.memory_space<vmem>>, vector<3x128xf32>
    %3 = vector.extract_strided_slice %2 {offsets = [0, 0], sizes = [1, 128], strides = [1, 1]} : vector<3x128xf32> to vector<1x128xf32>
    %4 = vector.extract_strided_slice %2 {offsets = [1, 0], sizes = [1, 128], strides = [1, 1]} : vector<3x128xf32> to vector<1x128xf32>
    %5 = vector.extract_strided_slice %2 {offsets = [2, 0], sizes = [1, 128], strides = [1, 1]} : vector<3x128xf32> to vector<1x128xf32>
    %cst = arith.constant dense<0.000000e+00> : vector<8x128xf32>
    %6 = tpu.matmul %0, %1, %cst {dimension_numbers = #tpu.dot_dimension_numbers<[1], [0], [0], [1], [0, 0, 1, 1], [], []>} : vector<8x128xf32>, vector<128x128xf32>, vector<8x128xf32> -> vector<8x128xf32>
    %7 = vector.broadcast %3 : vector<1x128xf32> to vector<8x128xf32>
    %8 = arith.addf %6, %7 : vector<8x128xf32>
    %cst_5 = arith.constant dense<0.000000e+00> : vector<8xf32>
    %9 = vector.multi_reduction <add>, %8, %cst_5 [1] : vector<8x128xf32> to vector<8xf32>
    %10 = vector.shape_cast %9 : vector<8xf32> to vector<8x1xf32>
    %cst_6 = arith.constant 1.562500e-02 : f32
    %11 = vector.broadcast %cst_6 : f32 to vector<8x1xf32>
    %12 = arith.mulf %10, %11 : vector<8x1xf32>
    %13 = arith.mulf %8, %8 : vector<8x128xf32>
    %cst_7 = arith.constant dense<0.000000e+00> : vector<8xf32>
    %14 = vector.multi_reduction <add>, %13, %cst_7 [1] : vector<8x128xf32> to vector<8xf32>
    %15 = vector.shape_cast %14 : vector<8xf32> to vector<8x1xf32>
    %cst_8 = arith.constant 1.562500e-02 : f32
    %16 = vector.broadcast %cst_8 : f32 to vector<8x1xf32>
    %17 = arith.mulf %15, %16 : vector<8x1xf32>
    %18 = arith.mulf %12, %12 : vector<8x1xf32>
    %19 = arith.subf %17, %18 : vector<8x1xf32>
    %cst_9 = arith.constant 0.000000e+00 : f32
    %20 = vector.broadcast %cst_9 : f32 to vector<8x1xf32>
    %21 = arith.maximumf %19, %20 : vector<8x1xf32>
    %cst_10 = arith.constant 9.99999974E-6 : f32
    %22 = vector.broadcast %cst_10 : f32 to vector<8x1xf32>
    %23 = arith.addf %21, %22 : vector<8x1xf32>
    %24 = math.rsqrt %23 : vector<8x1xf32>
    %25 = vector.broadcast %12 : vector<8x1xf32> to vector<8x128xf32>
    %26 = arith.subf %8, %25 : vector<8x128xf32>
    %27 = vector.broadcast %24 : vector<8x1xf32> to vector<8x128xf32>
    %28 = vector.broadcast %4 : vector<1x128xf32> to vector<8x128xf32>
    %29 = arith.mulf %27, %28 : vector<8x128xf32>
    %30 = arith.mulf %26, %29 : vector<8x128xf32>
    %31 = vector.broadcast %5 : vector<1x128xf32> to vector<8x128xf32>
    %32 = arith.addf %30, %31 : vector<8x128xf32>
    %cst_11 = arith.constant 5.000000e-01 : f32
    %33 = vector.broadcast %cst_11 : f32 to vector<8x128xf32>
    %34 = arith.mulf %33, %32 : vector<8x128xf32>
    %cst_12 = arith.constant 0.707106769 : f32
    %35 = vector.broadcast %cst_12 : f32 to vector<8x128xf32>
    %36 = arith.mulf %32, %35 : vector<8x128xf32>
    %37 = math.erf %36 : vector<8x128xf32>
    %cst_13 = arith.constant 1.000000e+00 : f32
    %38 = vector.broadcast %cst_13 : f32 to vector<8x128xf32>
    %39 = arith.addf %38, %37 : vector<8x128xf32>
    %40 = arith.mulf %34, %39 : vector<8x128xf32>
    %c0_14 = arith.constant 0 : index
    %c0_15 = arith.constant 0 : index
    %41 = vector.load %arg4[%c0_14, %c0_15] : memref<128x128xf32, #tpu.memory_space<vmem>>, vector<128x128xf32>
    %c0_16 = arith.constant 0 : index
    %c0_17 = arith.constant 0 : index
    %42 = vector.load %arg5[%c0_16, %c0_17] : memref<3x128xf32, #tpu.memory_space<vmem>>, vector<3x128xf32>
    %43 = vector.extract_strided_slice %42 {offsets = [0, 0], sizes = [1, 128], strides = [1, 1]} : vector<3x128xf32> to vector<1x128xf32>
    %44 = vector.extract_strided_slice %42 {offsets = [1, 0], sizes = [1, 128], strides = [1, 1]} : vector<3x128xf32> to vector<1x128xf32>
    %45 = vector.extract_strided_slice %42 {offsets = [2, 0], sizes = [1, 128], strides = [1, 1]} : vector<3x128xf32> to vector<1x128xf32>
    %cst_18 = arith.constant dense<0.000000e+00> : vector<8x128xf32>
    %46 = tpu.matmul %40, %41, %cst_18 {dimension_numbers = #tpu.dot_dimension_numbers<[1], [0], [0], [1], [0, 0, 1, 1], [], []>} : vector<8x128xf32>, vector<128x128xf32>, vector<8x128xf32> -> vector<8x128xf32>
    %47 = vector.broadcast %43 : vector<1x128xf32> to vector<8x128xf32>
    %48 = arith.addf %46, %47 : vector<8x128xf32>
    %cst_19 = arith.constant dense<0.000000e+00> : vector<8xf32>
    %49 = vector.multi_reduction <add>, %48, %cst_19 [1] : vector<8x128xf32> to vector<8xf32>
    %50 = vector.shape_cast %49 : vector<8xf32> to vector<8x1xf32>
    %cst_20 = arith.constant 3.125000e-02 : f32
    %51 = vector.broadcast %cst_20 : f32 to vector<8x1xf32>
    %52 = arith.mulf %50, %51 : vector<8x1xf32>
    %53 = arith.mulf %48, %48 : vector<8x128xf32>
    %cst_21 = arith.constant dense<0.000000e+00> : vector<8xf32>
    %54 = vector.multi_reduction <add>, %53, %cst_21 [1] : vector<8x128xf32> to vector<8xf32>
    %55 = vector.shape_cast %54 : vector<8xf32> to vector<8x1xf32>
    %cst_22 = arith.constant 3.125000e-02 : f32
    %56 = vector.broadcast %cst_22 : f32 to vector<8x1xf32>
    %57 = arith.mulf %55, %56 : vector<8x1xf32>
    %58 = arith.mulf %52, %52 : vector<8x1xf32>
    %59 = arith.subf %57, %58 : vector<8x1xf32>
    %cst_23 = arith.constant 0.000000e+00 : f32
    %60 = vector.broadcast %cst_23 : f32 to vector<8x1xf32>
    %61 = arith.maximumf %59, %60 : vector<8x1xf32>
    %cst_24 = arith.constant 9.99999974E-6 : f32
    %62 = vector.broadcast %cst_24 : f32 to vector<8x1xf32>
    %63 = arith.addf %61, %62 : vector<8x1xf32>
    %64 = math.rsqrt %63 : vector<8x1xf32>
    %65 = vector.broadcast %52 : vector<8x1xf32> to vector<8x128xf32>
    %66 = arith.subf %48, %65 : vector<8x128xf32>
    %67 = vector.broadcast %64 : vector<8x1xf32> to vector<8x128xf32>
    %68 = vector.broadcast %44 : vector<1x128xf32> to vector<8x128xf32>
    %69 = arith.mulf %67, %68 : vector<8x128xf32>
    %70 = arith.mulf %66, %69 : vector<8x128xf32>
    %71 = vector.broadcast %45 : vector<1x128xf32> to vector<8x128xf32>
    %72 = arith.addf %70, %71 : vector<8x128xf32>
    %cst_25 = arith.constant 5.000000e-01 : f32
    %73 = vector.broadcast %cst_25 : f32 to vector<8x128xf32>
    %74 = arith.mulf %73, %72 : vector<8x128xf32>
    %cst_26 = arith.constant 0.707106769 : f32
    %75 = vector.broadcast %cst_26 : f32 to vector<8x128xf32>
    %76 = arith.mulf %72, %75 : vector<8x128xf32>
    %77 = math.erf %76 : vector<8x128xf32>
    %cst_27 = arith.constant 1.000000e+00 : f32
    %78 = vector.broadcast %cst_27 : f32 to vector<8x128xf32>
    %79 = arith.addf %78, %77 : vector<8x128xf32>
    %80 = arith.mulf %74, %79 : vector<8x128xf32>
    %c0_28 = arith.constant 0 : index
    %c0_29 = arith.constant 0 : index
    %81 = vector.load %arg6[%c0_28, %c0_29] : memref<128x128xf32, #tpu.memory_space<vmem>>, vector<128x128xf32>
    %c0_30 = arith.constant 0 : index
    %c0_31 = arith.constant 0 : index
    %82 = vector.load %arg7[%c0_30, %c0_31] : memref<1x128xf32, #tpu.memory_space<vmem>>, vector<1x128xf32>
    %cst_32 = arith.constant dense<0.000000e+00> : vector<8x128xf32>
    %83 = tpu.matmul %80, %81, %cst_32 {dimension_numbers = #tpu.dot_dimension_numbers<[1], [0], [0], [1], [0, 0, 1, 1], [], []>} : vector<8x128xf32>, vector<128x128xf32>, vector<8x128xf32> -> vector<8x128xf32>
    %84 = vector.broadcast %82 : vector<1x128xf32> to vector<8x128xf32>
    %85 = arith.addf %83, %84 : vector<8x128xf32>
    %c0_33 = arith.constant 0 : index
    %c0_34 = arith.constant 0 : index
    %86 = vector.load %arg8[%c0_33, %c0_34] : memref<8x128xf32, #tpu.memory_space<vmem>>, vector<8x128xf32>
    tpu.vector_store %arg8[%c0_33, %c0_34], %85 {strides = array<i32>} : memref<8x128xf32, #tpu.memory_space<vmem>>, vector<8x128xf32>,
    return
  }
  func.func @transform_0(%arg0: i32) -> (i32, i32) {
    %c0_i32 = arith.constant 0 : i32
    %c0_i32_0 = arith.constant 0 : i32
    return %arg0, %c0_i32 : i32, i32
  }
  func.func @transform_1(%arg0: i32) -> (i32, i32) {
    %c0_i32 = arith.constant 0 : i32
    %c0_i32_0 = arith.constant 0 : i32
    %c0_i32_1 = arith.constant 0 : i32
    return %c0_i32, %c0_i32_0 : i32, i32
  }
  func.func @transform_2(%arg0: i32) -> (i32, i32) {
    %c0_i32 = arith.constant 0 : i32
    %c0_i32_0 = arith.constant 0 : i32
    %c0_i32_1 = arith.constant 0 : i32
    return %c0_i32, %c0_i32_0 : i32, i32
  }
  func.func @transform_3(%arg0: i32) -> (i32, i32) {
    %c0_i32 = arith.constant 0 : i32
    %c0_i32_0 = arith.constant 0 : i32
    %c0_i32_1 = arith.constant 0 : i32
    return %c0_i32, %c0_i32_0 : i32, i32
  }
  func.func @transform_4(%arg0: i32) -> (i32, i32) {
    %c0_i32 = arith.constant 0 : i32
    %c0_i32_0 = arith.constant 0 : i32
    %c0_i32_1 = arith.constant 0 : i32
    return %c0_i32, %c0_i32_0 : i32, i32
  }
  func.func @transform_5(%arg0: i32) -> (i32, i32) {
    %c0_i32 = arith.constant 0 : i32
    %c0_i32_0 = arith.constant 0 : i32
    %c0_i32_1 = arith.constant 0 : i32
    return %c0_i32, %c0_i32_0 : i32, i32
  }
  func.func @transform_6(%arg0: i32) -> (i32, i32) {
    %c0_i32 = arith.constant 0 : i32
    %c0_i32_0 = arith.constant 0 : i32
    %c0_i32_1 = arith.constant 0 : i32
    return %c0_i32, %c0_i32_0 : i32, i32
  }
  func.func @transform_7(%arg0: i32) -> (i32, i32) {
    %c0_i32 = arith.constant 0 : i32
    %c0_i32_0 = arith.constant 0 : i32
    return %arg0, %c0_i32 : i32, i32
  }
}

module attributes {stable_mosaic.version = 11 : i64} {
  func.func @_fused_head_kernel(%arg0: i32, %arg1: memref<8x128xf32, #tpu.memory_space<vmem>>, %arg2: memref<128x128xf32, #tpu.memory_space<vmem>>, %arg3: memref<3x128xf32, #tpu.memory_space<vmem>>, %arg4: memref<128x128xf32, #tpu.memory_space<vmem>>, %arg5: memref<3x128xf32, #tpu.memory_space<vmem>>, %arg6: memref<128x128xf32, #tpu.memory_space<vmem>>, %arg7: memref<1x128xf32, #tpu.memory_space<vmem>>, %arg8: memref<8x128xf32, #tpu.memory_space<vmem>>) attributes {dimension_semantics = [#tpu.dimension_semantics<parallel>], iteration_bounds = array<i64: 1>, scalar_prefetch = 0 : i64, scratch_operands = 0 : i64, tpu.core_type = #tpu.core_type<tc>, window_params = [{transform_indices = @transform_0, window_bounds = array<i64: 8, 128>}, {pipeline_mode = #tpu.pipeline_mode<synchronous>, transform_indices = @transform_1, window_bounds = array<i64: 128, 128>}, {pipeline_mode = #tpu.pipeline_mode<synchronous>, transform_indices = @transform_2, window_bounds = array<i64: 3, 128>}, {pipeline_mode = #tpu.pipeline_mode<synchronous>, transform_indices = @transform_3, window_bounds = array<i64: 128, 128>}, {pipeline_mode = #tpu.pipeline_mode<synchronous>, transform_indices = @transform_4, window_bounds = array<i64: 3, 128>}, {pipeline_mode = #tpu.pipeline_mode<synchronous>, transform_indices = @transform_5, window_bounds = array<i64: 128, 128>}, {pipeline_mode = #tpu.pipeline_mode<synchronous>, transform_indices = @transform_6, window_bounds = array<i64: 1, 128>}, {transform_indices = @transform_7, window_bounds = array<i64: 8, 128>}]} {
    %c0 = arith.constant 0 : index
    %c0_0 = arith.constant 0 : index
    %0 = vector.load %arg1[%c0, %c0_0] : memref<8x128xf32, #tpu.memory_space<vmem>>, vector<8x128xf32>
    %c0_1 = arith.constant 0 : index
    %c0_2 = arith.constant 0 : index
    %1 = vector.load %arg2[%c0_1, %c0_2] : memref<128x128xf32, #tpu.memory_space<vmem>>, vector<128x128xf32>
    %c0_3 = arith.constant 0 : index
    %c0_4 = arith.constant 0 : index
    %2 = vector.load %arg3[%c0_3, %c0_4] : memref<3x128xf32, #tpu.memory_space<vmem>>, vector<3x128xf32>
    %3 = vector.extract_strided_slice %2 {offsets = [0, 0], sizes = [1, 128], strides = [1, 1]} : vector<3x128xf32> to vector<1x128xf32>
    %4 = vector.extract_strided_slice %2 {offsets = [1, 0], sizes = [1, 128], strides = [1, 1]} : vector<3x128xf32> to vector<1x128xf32>
    %5 = vector.extract_strided_slice %2 {offsets = [2, 0], sizes = [1, 128], strides = [1, 1]} : vector<3x128xf32> to vector<1x128xf32>
    %cst = arith.constant dense<0.000000e+00> : vector<8x128xf32>
    %6 = tpu.matmul %0, %1, %cst {dimension_numbers = #tpu.dot_dimension_numbers<[1], [0], [0], [1], [0, 0, 1, 1], [], []>} : vector<8x128xf32>, vector<128x128xf32>, vector<8x128xf32> -> vector<8x128xf32>
    %7 = vector.broadcast %3 : vector<1x128xf32> to vector<8x128xf32>
    %8 = arith.addf %6, %7 : vector<8x128xf32>
    %cst_5 = arith.constant dense<0.000000e+00> : vector<8xf32>
    %9 = vector.multi_reduction <add>, %8, %cst_5 [1] : vector<8x128xf32> to vector<8xf32>
    %10 = vector.shape_cast %9 : vector<8xf32> to vector<8x1xf32>
    %cst_6 = arith.constant 1.562500e-02 : f32
    %11 = vector.broadcast %cst_6 : f32 to vector<8x1xf32>
    %12 = arith.mulf %10, %11 : vector<8x1xf32>
    %13 = arith.mulf %8, %8 : vector<8x128xf32>
    %cst_7 = arith.constant dense<0.000000e+00> : vector<8xf32>
    %14 = vector.multi_reduction <add>, %13, %cst_7 [1] : vector<8x128xf32> to vector<8xf32>
    %15 = vector.shape_cast %14 : vector<8xf32> to vector<8x1xf32>
    %cst_8 = arith.constant 1.562500e-02 : f32
    %16 = vector.broadcast %cst_8 : f32 to vector<8x1xf32>
    %17 = arith.mulf %15, %16 : vector<8x1xf32>
    %18 = arith.mulf %12, %12 : vector<8x1xf32>
    %19 = arith.subf %17, %18 : vector<8x1xf32>
    %cst_9 = arith.constant 0.000000e+00 : f32
    %20 = vector.broadcast %cst_9 : f32 to vector<8x1xf32>
    %21 = arith.maximumf %19, %20 : vector<8x1xf32>
    %cst_10 = arith.constant 9.99999974E-6 : f32
    %22 = vector.broadcast %cst_10 : f32 to vector<8x1xf32>
    %23 = arith.addf %21, %22 : vector<8x1xf32>
    %24 = math.rsqrt %23 : vector<8x1xf32>
    %25 = vector.broadcast %12 : vector<8x1xf32> to vector<8x128xf32>
    %26 = arith.subf %8, %25 : vector<8x128xf32>
    %27 = vector.broadcast %24 : vector<8x1xf32> to vector<8x128xf32>
    %28 = vector.broadcast %4 : vector<1x128xf32> to vector<8x128xf32>
    %29 = arith.mulf %27, %28 : vector<8x128xf32>
    %30 = arith.mulf %26, %29 : vector<8x128xf32>
    %31 = vector.broadcast %5 : vector<1x128xf32> to vector<8x128xf32>
    %32 = arith.addf %30, %31 : vector<8x128xf32>
    %cst_11 = arith.constant 5.000000e-01 : f32
    %33 = vector.broadcast %cst_11 : f32 to vector<8x128xf32>
    %34 = arith.mulf %33, %32 : vector<8x128xf32>
    %cst_12 = arith.constant 0.707106769 : f32
    %35 = vector.broadcast %cst_12 : f32 to vector<8x128xf32>
    %36 = arith.mulf %32, %35 : vector<8x128xf32>
    %37 = math.erf %36 : vector<8x128xf32>
    %cst_13 = arith.constant 1.000000e+00 : f32
    %38 = vector.broadcast %cst_13 : f32 to vector<8x128xf32>
    %39 = arith.addf %38, %37 : vector<8x128xf32>
    %40 = arith.mulf %34, %39 : vector<8x128xf32>
    %c0_14 = arith.constant 0 : index
    %c0_15 = arith.constant 0 : index
    %41 = vector.load %arg4[%c0_14, %c0_15] : memref<128x128xf32, #tpu.memory_space<vmem>>, vector<128x128xf32>
    %c0_16 = arith.constant 0 : index
    %c0_17 = arith.constant 0 : index
    %42 = vector.load %arg5[%c0_16, %c0_17] : memref<3x128xf32, #tpu.memory_space<vmem>>, vector<3x128xf32>
    %43 = vector.extract_strided_slice %42 {offsets = [0, 0], sizes = [1, 128], strides = [1, 1]} : vector<3x128xf32> to vector<1x128xf32>
    %44 = vector.extract_strided_slice %42 {offsets = [1, 0], sizes = [1, 128], strides = [1, 1]} : vector<3x128xf32> to vector<1x128xf32>
    %45 = vector.extract_strided_slice %42 {offsets = [2, 0], sizes = [1, 128], strides = [1, 1]} : vector<3x128xf32> to vector<1x128xf32>
    %cst_18 = arith.constant dense<0.000000e+00> : vector<8x128xf32>
    %46 = tpu.matmul %40, %41, %cst_18 {dimension_numbers = #tpu.dot_dimension_numbers<[1], [0], [0], [1], [0, 0, 1, 1], [], []>} : vector<8x128xf32>, vector<128x128xf32>, vector<8x128xf32> -> vector<8x128xf32>
    %47 = vector.broadcast %43 : vector<1x128xf32> to vector<8x128xf32>
    %48 = arith.addf %46, %47 : vector<8x128xf32>
    %cst_19 = arith.constant dense<0.000000e+00> : vector<8xf32>
    %49 = vector.multi_reduction <add>, %48, %cst_19 [1] : vector<8x128xf32> to vector<8xf32>
    %50 = vector.shape_cast %49 : vector<8xf32> to vector<8x1xf32>
    %cst_20 = arith.constant 3.125000e-02 : f32
    %51 = vector.broadcast %cst_20 : f32 to vector<8x1xf32>
    %52 = arith.mulf %50, %51 : vector<8x1xf32>
    %53 = arith.mulf %48, %48 : vector<8x128xf32>
    %cst_21 = arith.constant dense<0.000000e+00> : vector<8xf32>
    %54 = vector.multi_reduction <add>, %53, %cst_21 [1] : vector<8x128xf32> to vector<8xf32>
    %55 = vector.shape_cast %54 : vector<8xf32> to vector<8x1xf32>
    %cst_22 = arith.constant 3.125000e-02 : f32
    %56 = vector.broadcast %cst_22 : f32 to vector<8x1xf32>
    %57 = arith.mulf %55, %56 : vector<8x1xf32>
    %58 = arith.mulf %52, %52 : vector<8x1xf32>
    %59 = arith.subf %57, %58 : vector<8x1xf32>
    %cst_23 = arith.constant 0.000000e+00 : f32
    %60 = vector.broadcast %cst_23 : f32 to vector<8x1xf32>
    %61 = arith.maximumf %59, %60 : vector<8x1xf32>
    %cst_24 = arith.constant 9.99999974E-6 : f32
    %62 = vector.broadcast %cst_24 : f32 to vector<8x1xf32>
    %63 = arith.addf %61, %62 : vector<8x1xf32>
    %64 = math.rsqrt %63 : vector<8x1xf32>
    %65 = vector.broadcast %52 : vector<8x1xf32> to vector<8x128xf32>
    %66 = arith.subf %48, %65 : vector<8x128xf32>
    %67 = vector.broadcast %64 : vector<8x1xf32> to vector<8x128xf32>
    %68 = vector.broadcast %44 : vector<1x128xf32> to vector<8x128xf32>
    %69 = arith.mulf %67, %68 : vector<8x128xf32>
    %70 = arith.mulf %66, %69 : vector<8x128xf32>
    %71 = vector.broadcast %45 : vector<1x128xf32> to vector<8x128xf32>
    %72 = arith.addf %70, %71 : vector<8x128xf32>
    %cst_25 = arith.constant 5.000000e-01 : f32
    %73 = vector.broadcast %cst_25 : f32 to vector<8x128xf32>
    %74 = arith.mulf %73, %72 : vector<8x128xf32>
    %cst_26 = arith.constant 0.707106769 : f32
    %75 = vector.broadcast %cst_26 : f32 to vector<8x128xf32>
    %76 = arith.mulf %72, %75 : vector<8x128xf32>
    %77 = math.erf %76 : vector<8x128xf32>
    %cst_27 = arith.constant 1.000000e+00 : f32
    %78 = vector.broadcast %cst_27 : f32 to vector<8x128xf32>
    %79 = arith.addf %78, %77 : vector<8x128xf32>
    %80 = arith.mulf %74, %79 : vector<8x128xf32>
    %c0_28 = arith.constant 0 : index
    %c0_29 = arith.constant 0 : index
    %81 = vector.load %arg6[%c0_28, %c0_29] : memref<128x128xf32, #tpu.memory_space<vmem>>, vector<128x128xf32>
    %c0_30 = arith.constant 0 : index
    %c0_31 = arith.constant 0 : index
    %82 = vector.load %arg7[%c0_30, %c0_31] : memref<1x128xf32, #tpu.memory_space<vmem>>, vector<1x128xf32>
    %cst_32 = arith.constant dense<0.000000e+00> : vector<8x128xf32>
    %83 = tpu.matmul %80, %81, %cst_32 {dimension_numbers = #tpu.dot_dimension_numbers<[1], [0], [0], [1], [0, 0, 1, 1], [], []>} : vector<8x128xf32>, vector<128x128xf32>, vector<8x128xf32> -> vector<8x128xf32>
    %84 = vector.broadcast %82 : vector<1x128xf32> to vector<8x128xf32>
    %85 = arith.addf %83, %84 : vector<8x128xf32>
    %c0_33 = arith.constant 0 : index
    %c0_34 = arith.constant 0 : index
    %86 = vector.load %arg8[%c0_33, %c0_34] : memref<8x128xf32, #tpu.memory_space<vmem>>, vector<8x128xf32>
    tpu.vector_store %arg8[%c0_33, %c0_34], %85 {strides = array<i32>} : memref<8x128xf32, #tpu.memory_space<vmem>>, vector<8x128xf32>,
    return
  }
  func.func @transform_0(%arg0: i32) -> (i32, i32) {
    %c0_i32 = arith.constant 0 : i32
    %c0_i32_0 = arith.constant 0 : i32
    return %arg0, %c0_i32 : i32, i32
  }
  func.func @transform_1(%arg0: i32) -> (i32, i32) {
    %c0_i32 = arith.constant 0 : i32
    %c0_i32_0 = arith.constant 0 : i32
    %c0_i32_1 = arith.constant 0 : i32
    return %c0_i32, %c0_i32_0 : i32, i32
  }
  func.func @transform_2(%arg0: i32) -> (i32, i32) {
    %c0_i32 = arith.constant 0 : i32
    %c0_i32_0 = arith.constant 0 : i32
    %c0_i32_1 = arith.constant 0 : i32
    return %c0_i32, %c0_i32_0 : i32, i32
  }
  func.func @transform_3(%arg0: i32) -> (i32, i32) {
    %c0_i32 = arith.constant 0 : i32
    %c0_i32_0 = arith.constant 0 : i32
    %c0_i32_1 = arith.constant 0 : i32
    return %c0_i32, %c0_i32_0 : i32, i32
  }
  func.func @transform_4(%arg0: i32) -> (i32, i32) {
    %c0_i32 = arith.constant 0 : i32
    %c0_i32_0 = arith.constant 0 : i32
    %c0_i32_1 = arith.constant 0 : i32
    return %c0_i32, %c0_i32_0 : i32, i32
  }
  func.func @transform_5(%arg0: i32) -> (i32, i32) {
    %c0_i32 = arith.constant 0 : i32
    %c0_i32_0 = arith.constant 0 : i32
    %c0_i32_1 = arith.constant 0 : i32
    return %c0_i32, %c0_i32_0 : i32, i32
  }
  func.func @transform_6(%arg0: i32) -> (i32, i32) {
    %c0_i32 = arith.constant 0 : i32
    %c0_i32_0 = arith.constant 0 : i32
    %c0_i32_1 = arith.constant 0 : i32
    return %c0_i32, %c0_i32_0 : i32, i32
  }
  func.func @transform_7(%arg0: i32) -> (i32, i32) {
    %c0_i32 = arith.constant 0 : i32
    %c0_i32_0 = arith.constant 0 : i32
    return %arg0, %c0_i32 : i32, i32
  }
}

</mosaic_0001>

<llo_original>
// kernel: tpu_custom_call.1
$region0: #{tpu_custom_call.1}
  #allocation0 [shape = 'u32[]', space=smem, size = 0x4, offset = 0x4, fixed_abs, tag = 'smem constant byte address 0x4 - core index']
  #allocation1 [shape = 'u32[144,128]{1,0:T(1,128)}', space=vmem, size = 0x12000, scoped, tag = 'internal scratch']
  %s0 = inlined_call_operand.hbm [shape: f32[8,128], index: 0, kind: input, shape index: {}]
  %s1 = inlined_call_operand.hbm [shape: f32[128,128], index: 1, kind: input, shape index: {}]
  %s2 = inlined_call_operand.hbm [shape: f32[3,128], index: 2, kind: input, shape index: {}]
  %s3 = inlined_call_operand.hbm [shape: f32[128,128], index: 3, kind: input, shape index: {}]
  %s4 = inlined_call_operand.vmem [shape: f32[3,128], index: 4, kind: input, shape index: {}]
  %s5 = inlined_call_operand.hbm [shape: f32[128,128], index: 5, kind: input, shape index: {}]
  %s6 = inlined_call_operand.vmem [shape: f32[1,128], index: 6, kind: input, shape index: {}]
  %s7 = inlined_call_operand.hbm [shape: f32[8,128], index: 7, kind: output, shape index: {}]
  %s8 = sld [smem:[#allocation0]]
  $region58: #{tpu_custom_call.1} parent=0
    _
  %s10 = ssub.s32 1, %s8
  %s11 = scalar_select 0, %s10, %s8
  $region1: #{tpu_custom_call.1} parent=0
    #allocation2 [shape = 'u8[4096]{0}', space=vmem, size = 0x1000, scoped, tag = 'input window, operand 0, single buffered']
    #allocation3 [shape = 's32[1]{0}', space=sflag, size = 0x4, scoped, tag = 'scoped memory for tpu_custom_call.1']
    #allocation4 [shape = 's32[1]{0}', space=sflag, size = 0x4, scoped, tag = 'scoped memory for tpu_custom_call.1']
    #allocation5 [shape = 'u8[65536]{0}', space=vmem, size = 0x10000, scoped, tag = 'input window, operand 1, single buffered']
    #allocation6 [shape = 's32[1]{0}', space=sflag, size = 0x4, scoped, tag = 'scoped memory for tpu_custom_call.1']
    #allocation7 [shape = 'u8[2048]{0}', space=vmem, size = 0x800, scoped, tag = 'input window, operand 2, single buffered']
    #allocation8 [shape = 'u8[65536]{0}', space=vmem, size = 0x10000, scoped, tag = 'input window, operand 3, single buffered']
    #allocation9 [shape = 's32[1]{0}', space=sflag, size = 0x4, scoped, tag = 'scoped memory for tpu_custom_call.1']
    #allocation10 [shape = 'u8[65536]{0}', space=vmem, size = 0x10000, scoped, tag = 'input window, operand 5, single buffered']
    #allocation11 [shape = 'u8[4096]{0}', space=vmem, size = 0x1000, scoped, tag = 'output window, operand 0, single buffered']
    %12 = vsyncpa [#allocation3], 0
    %13 = vsyncpa [#allocation6], 0
    %14 = vsyncpa [#allocation9], 0
    %15 = vsyncpa [#allocation4], 0
    // Predicated region
    $region2: #{tpu_custom_call.1} parent=1 // pred_check
      _
    $region3: #{tpu_custom_call.1} parent=1 // pred_check_branch
      %17 = sbr.rel (0) target = $region5
    $region4: #{tpu_custom_call.1} parent=1 // pred_region
      %s19 = ssub.s32 128, 128
      %20 = vsyncadd [#allocation3], %s19
      %s22 = sshll.u32 [#allocation2], 4
      %s23 = int_to_ptr.vmem [resolvable:$true] %s22
      %25 = dma.hbm_to_vmem [thread:$0]  %s0, 128, %s23, [#allocation3]
    $region5: #{tpu_custom_call.1} parent=1 // pred_fallthru
      _
    // Predicated region
    $region6: #{tpu_custom_call.1} parent=1 // pred_check
      _
    $region7: #{tpu_custom_call.1} parent=1 // pred_check_branch
      %27 = sbr.rel (0) target = $region9
    $region8: #{tpu_custom_call.1} parent=1 // pred_region
      %s29 = ssub.s32 2048, 2048
      %30 = vsyncadd [#allocation6], %s29
      %s31 = sshll.u32 [#allocation5], 4
      %s32 = int_to_ptr.vmem [resolvable:$true] %s31
      %37 = dma.hbm_to_vmem [thread:$0]  %s1, 2048, %s32, [#allocation6], 128, 128, 8
    $region9: #{tpu_custom_call.1} parent=1 // pred_fallthru
      _
    // Predicated region
    $region10: #{tpu_custom_call.1} parent=1 // pred_check
      _
    $region11: #{tpu_custom_call.1} parent=1 // pred_check_branch
      %39 = sbr.rel (0) target = $region13
    $region12: #{tpu_custom_call.1} parent=1 // pred_region
      %s41 = ssub.s32 64, 64
      %42 = vsyncadd [#allocation6], %s41
      %s44 = sshll.u32 [#allocation7], 4
      %s45 = int_to_ptr.vmem [resolvable:$true] %s44
      %47 = dma.hbm_to_vmem [thread:$0]  %s2, 64, %s45, [#allocation6]
    $region13: #{tpu_custom_call.1} parent=1 // pred_fallthru
      _
    // Predicated region
    $region14: #{tpu_custom_call.1} parent=1 // pred_check
      _
    $region15: #{tpu_custom_call.1} parent=1 // pred_check_branch
      %49 = sbr.rel (0) target = $region17
    $region16: #{tpu_custom_call.1} parent=1 // pred_region
      %s51 = ssub.s32 2048, 2048
      %52 = vsyncadd [#allocation9], %s51
      %s53 = sshll.u32 [#allocation8], 4
      %s54 = int_to_ptr.vmem [resolvable:$true] %s53
      %59 = dma.hbm_to_vmem [thread:$0]  %s3, 2048, %s54, [#allocation9], 128, 128, 8
    $region17: #{tpu_custom_call.1} parent=1 // pred_fallthru
      _
    // Predicated region
    $region18: #{tpu_custom_call.1} parent=1 // pred_check
      _
    $region19: #{tpu_custom_call.1} parent=1 // pred_check_branch
      %61 = sbr.rel (0) target = $region21
    $region20: #{tpu_custom_call.1} parent=1 // pred_region
      _
    $region21: #{tpu_custom_call.1} parent=1 // pred_fallthru
      _
    // Predicated region
    $region22: #{tpu_custom_call.1} parent=1 // pred_check
      _
    $region23: #{tpu_custom_call.1} parent=1 // pred_check_branch
      %63 = sbr.rel (0) target = $region25
    $region24: #{tpu_custom_call.1} parent=1 // pred_region
      %s65 = ssub.s32 2048, 2048
      %66 = vsyncadd [#allocation9], %s65
      %s67 = sshll.u32 [#allocation10], 4
      %s68 = int_to_ptr.vmem [resolvable:$true] %s67
      %73 = dma.hbm_to_vmem [thread:$0]  %s5, 2048, %s68, [#allocation9], 128, 128, 8
    $region25: #{tpu_custom_call.1} parent=1 // pred_fallthru
      _
    // Predicated region
    $region26: #{tpu_custom_call.1} parent=1 // pred_check
      _
    $region27: #{tpu_custom_call.1} parent=1 // pred_check_branch
      %75 = sbr.rel (0) target = $region29
    $region28: #{tpu_custom_call.1} parent=1 // pred_region
      _
    $region29: #{tpu_custom_call.1} parent=1 // pred_fallthru
      _
    // Predicated region
    $region30: #{tpu_custom_call.1} parent=1 // pred_check
      _
    $region31: #{tpu_custom_call.1} parent=1 // pred_check_branch
      %77 = sbr.rel (0) target = $region33
    $region32: #{tpu_custom_call.1} parent=1 // pred_region
      %78 = dma.done [#allocation3], 128
    $region33: #{tpu_custom_call.1} parent=1 // pred_fallthru
      _
    // Predicated region
    $region34: #{tpu_custom_call.1} parent=1 // pred_check
      _
    $region35: #{tpu_custom_call.1} parent=1 // pred_check_branch
      %80 = sbr.rel (0) target = $region37
    $region36: #{tpu_custom_call.1} parent=1 // pred_region
      %81 = dma.done [#allocation6], 2048
    $region37: #{tpu_custom_call.1} parent=1 // pred_fallthru
      _
    // Predicated region
    $region38: #{tpu_custom_call.1} parent=1 // pred_check
      _
    $region39: #{tpu_custom_call.1} parent=1 // pred_check_branch
      %83 = sbr.rel (0) target = $region41
    $region40: #{tpu_custom_call.1} parent=1 // pred_region
      %84 = dma.done [#allocation6], 64
    $region41: #{tpu_custom_call.1} parent=1 // pred_fallthru
      _
    // Predicated region
    $region42: #{tpu_custom_call.1} parent=1 // pred_check
      _
    $region43: #{tpu_custom_call.1} parent=1 // pred_check_branch
      %86 = sbr.rel (0) target = $region45
    $region44: #{tpu_custom_call.1} parent=1 // pred_region
      %87 = dma.done [#allocation9], 2048
    $region45: #{tpu_custom_call.1} parent=1 // pred_fallthru
      _
    // Predicated region
    $region46: #{tpu_custom_call.1} parent=1 // pred_check
      _
    $region47: #{tpu_custom_call.1} parent=1 // pred_check_branch
      %89 = sbr.rel (0) target = $region49
    $region48: #{tpu_custom_call.1} parent=1 // pred_region
      %90 = dma.done [#allocation9], 2048
    $region49: #{tpu_custom_call.1} parent=1 // pred_fallthru
      _
    %v91 = vld [vmem:[#allocation2] sm:$0xff]
    %v92 = vld [vmem:[#allocation5] sm:$0xff]
    %v93 = vld [vmem:[#allocation5 + $0x8] sm:$0xff]
    %v94 = vld [vmem:[#allocation5 + $0x10] sm:$0xff]
    %v95 = vld [vmem:[#allocation5 + $0x18] sm:$0xff]
    %v96 = vld [vmem:[#allocation5 + $0x20] sm:$0xff]
    %v97 = vld [vmem:[#allocation5 + $0x28] sm:$0xff]
    %v98 = vld [vmem:[#allocation5 + $0x30] sm:$0xff]
    %v99 = vld [vmem:[#allocation5 + $0x38] sm:$0xff]
    %v100 = vld [vmem:[#allocation5 + $0x40] sm:$0xff]
    %v101 = vld [vmem:[#allocation5 + $0x48] sm:$0xff]
    %v102 = vld [vmem:[#allocation5 + $0x50] sm:$0xff]
    %v103 = vld [vmem:[#allocation5 + $0x58] sm:$0xff]
    %v104 = vld [vmem:[#allocation5 + $0x60] sm:$0xff]
    %v105 = vld [vmem:[#allocation5 + $0x68] sm:$0xff]
    %v106 = vld [vmem:[#allocation5 + $0x70] sm:$0xff]
    %v107 = vld [vmem:[#allocation5 + $0x78] sm:$0xff]
    %v108 = vld [vmem:[#allocation7] sm:$0x7]
    %v109 = vlaneseq
    %v110 = vshrl.u32 %v109, 7
    %v111 = vsub.s32 0, %v110
    %v112 = vrot.slane %v108, %v111
    %113 = vmatprep.subr.mxu0 0.0
    %114 = vmatpush1.msra.mxu0 %v107
    %115 = vmatprep.subr.mxu0 0.0
    %116 = vmatpush1.msra.mxu0 %v106
    %117 = vmatprep.subr.mxu0 0.0
    %118 = vmatpush1.msra.mxu0 %v105
    %119 = vmatprep.subr.mxu0 0.0
    %120 = vmatpush1.msra.mxu0 %v104
    %121 = vmatprep.subr.mxu0 0.0
    %122 = vmatpush1.msra.mxu0 %v103
    %123 = vmatprep.subr.mxu0 0.0
    %124 = vmatpush1.msra.mxu0 %v102
    %125 = vmatprep.subr.mxu0 0.0
    %126 = vmatpush1.msra.mxu0 %v101
    %127 = vmatprep.subr.mxu0 0.0
    %128 = vmatpush1.msra.mxu0 %v100
    %129 = vmatprep.subr.mxu0 0.0
    %130 = vmatpush1.msra.mxu0 %v99
    %131 = vmatprep.subr.mxu0 0.0
    %132 = vmatpush1.msra.mxu0 %v98
    %133 = vmatprep.subr.mxu0 0.0
    %134 = vmatpush1.msra.mxu0 %v97
    %135 = vmatprep.subr.mxu0 0.0
    %136 = vmatpush1.msra.mxu0 %v96
    %137 = vmatprep.subr.mxu0 0.0
    %138 = vmatpush1.msra.mxu0 %v95
    %139 = vmatprep.subr.mxu0 0.0
    %140 = vmatpush1.msra.mxu0 %v94
    %141 = vmatprep.subr.mxu0 0.0
    %142 = vmatpush1.msra.mxu0 %v93
    %143 = vmatprep.subr.mxu0 0.0
    %144 = vmatpush1.msra.mxu0 %v92
    %145 = vmatprep.subr.mxu0 0.0
    %146 = vmatpush2.msra.mxu0 0.0
    %147 = vmatprep.subr.mxu0 0.0
    %148 = vmatpush2.msra.mxu0 0.0
    %149 = vmatprep.subr.mxu0 0.0
    %150 = vmatpush2.msra.mxu0 0.0
    %151 = vmatprep.subr.mxu0 0.0
    %152 = vmatpush2.msra.mxu0 0.0
    %153 = vmatprep.subr.mxu0 0.0
    %154 = vmatpush2.msra.mxu0 0.0
    %155 = vmatprep.subr.mxu0 0.0
    %156 = vmatpush2.msra.mxu0 0.0
    %157 = vmatprep.subr.mxu0 0.0
    %158 = vmatpush2.msra.mxu0 0.0
    %159 = vmatprep.subr.mxu0 0.0
    %160 = vmatpush2.msra.mxu0 0.0
    %161 = vmatprep.subr.mxu0 0.0
    %162 = vmatpush2.msra.mxu0 0.0
    %163 = vmatprep.subr.mxu0 0.0
    %164 = vmatpush2.msra.mxu0 0.0
    %165 = vmatprep.subr.mxu0 0.0
    %166 = vmatpush2.msra.mxu0 0.0
    %167 = vmatprep.subr.mxu0 0.0
    %168 = vmatpush2.msra.mxu0 0.0
    %169 = vmatprep.subr.mxu0 0.0
    %170 = vmatpush2.msra.mxu0 0.0
    %171 = vmatprep.subr.mxu0 0.0
    %172 = vmatpush2.msra.mxu0 0.0
    %173 = vmatprep.subr.mxu0 0.0
    %174 = vmatpush2.msra.mxu0 0.0
    %175 = vmatprep.subr.mxu0 0.0
    %176 = vmatpush2.msra.mxu0 0.0
    %177 = vmatprep.mubr.f32.mxu0 0.0
    %178 = vmatmul.mubr.f32.gmra.mxu0 %v91
    %v179 = vpop.f32.mrf.mxu0
    %v180 = vadd.f32 %v112, %v179
    %v181 = vpop.f32.mrf.mxu0
    %182 = vdwg.mxu0
    %183 = vadd.xlane.f32.xlu0 %v180
    %v184 = vpop.xlane.xlu0 %183
    %v185 = vmul.f32 %v184, 0.015625
    %v186 = vmul.f32 %v180, %v180
    %187 = vadd.xlane.f32.xlu0 %v186
    %v188 = vpop.xlane.xlu0 %187
    %v189 = vmul.f32 %v188, 0.015625
    %v190 = vmul.f32 %v185, %v185
    %v191 = vsub.f32 %v189, %v190
    %v192 = vmax.f32 %v191, 0.0
    %v193 = vadd.f32 %v192, 1e-05
    %v194 = vrsqrt.pop %v193
    %v195 = vsub.f32 %v180, %v185
    %v196 = vlaneseq
    %v197 = vshrl.u32 %v196, 7
    %v198 = vsub.s32 1, %v197
    %v199 = vrot.slane %v108, %v198
    %v200 = vmul.f32 %v194, %v199
    %v201 = vmul.f32 %v195, %v200
    %v202 = vlaneseq
    %v203 = vshrl.u32 %v202, 7
    %v204 = vsub.s32 2, %v203
    %v205 = vrot.slane %v108, %v204
    %v206 = vadd.f32 %v201, %v205
    %v207 = vmul.f32 %v206, 0.5
    %v208 = vmul.f32 %v206, 0.70710677
    %v209 = verf.f32.pop %v208
    %v210 = vadd.f32 %v209, 1.0
    %v211 = vmul.f32 %v207, %v210
    %v212 = vld [vmem:[#allocation8] sm:$0xff]
    %v213 = vld [vmem:[#allocation8 + $0x8] sm:$0xff]
    %v214 = vld [vmem:[#allocation8 + $0x10] sm:$0xff]
    %v215 = vld [vmem:[#allocation8 + $0x18] sm:$0xff]
    %v216 = vld [vmem:[#allocation8 + $0x20] sm:$0xff]
    %v217 = vld [vmem:[#allocation8 + $0x28] sm:$0xff]
    %v218 = vld [vmem:[#allocation8 + $0x30] sm:$0xff]
    %v219 = vld [vmem:[#allocation8 + $0x38] sm:$0xff]
    %v220 = vld [vmem:[#allocation8 + $0x40] sm:$0xff]
    %v221 = vld [vmem:[#allocation8 + $0x48] sm:$0xff]
    %v222 = vld [vmem:[#allocation8 + $0x50] sm:$0xff]
    %v223 = vld [vmem:[#allocation8 + $0x58] sm:$0xff]
    %v224 = vld [vmem:[#allocation8 + $0x60] sm:$0xff]
    %v225 = vld [vmem:[#allocation8 + $0x68] sm:$0xff]
    %v226 = vld [vmem:[#allocation8 + $0x70] sm:$0xff]
    %v227 = vld [vmem:[#allocation8 + $0x78] sm:$0xff]
    %v228 = vld [vmem:[%s4] sm:$0x7]
    %v229 = vlaneseq
    %v230 = vshrl.u32 %v229, 7
    %v231 = vsub.s32 0, %v230
    %v232 = vrot.slane %v228, %v231
    %233 = vmatprep.subr.mxu0 0.0
    %234 = vmatpush1.msra.mxu0 %v227
    %235 = vmatprep.subr.mxu0 0.0
    %236 = vmatpush1.msra.mxu0 %v226
    %237 = vmatprep.subr.mxu0 0.0
    %238 = vmatpush1.msra.mxu0 %v225
    %239 = vmatprep.subr.mxu0 0.0
    %240 = vmatpush1.msra.mxu0 %v224
    %241 = vmatprep.subr.mxu0 0.0
    %242 = vmatpush1.msra.mxu0 %v223
    %243 = vmatprep.subr.mxu0 0.0
    %244 = vmatpush1.msra.mxu0 %v222
    %245 = vmatprep.subr.mxu0 0.0
    %246 = vmatpush1.msra.mxu0 %v221
    %247 = vmatprep.subr.mxu0 0.0
    %248 = vmatpush1.msra.mxu0 %v220
    %249 = vmatprep.subr.mxu0 0.0
    %250 = vmatpush1.msra.mxu0 %v219
    %251 = vmatprep.subr.mxu0 0.0
    %252 = vmatpush1.msra.mxu0 %v218
    %253 = vmatprep.subr.mxu0 0.0
    %254 = vmatpush1.msra.mxu0 %v217
    %255 = vmatprep.subr.mxu0 0.0
    %256 = vmatpush1.msra.mxu0 %v216
    %257 = vmatprep.subr.mxu0 0.0
    %258 = vmatpush1.msra.mxu0 %v215
    %259 = vmatprep.subr.mxu0 0.0
    %260 = vmatpush1.msra.mxu0 %v214
    %261 = vmatprep.subr.mxu0 0.0
    %262 = vmatpush1.msra.mxu0 %v213
    %263 = vmatprep.subr.mxu0 0.0
    %264 = vmatpush1.msra.mxu0 %v212
    %265 = vmatprep.subr.mxu0 0.0
    %266 = vmatpush2.msra.mxu0 0.0
    %267 = vmatprep.subr.mxu0 0.0
    %268 = vmatpush2.msra.mxu0 0.0
    %269 = vmatprep.subr.mxu0 0.0
    %270 = vmatpush2.msra.mxu0 0.0
    %271 = vmatprep.subr.mxu0 0.0
    %272 = vmatpush2.msra.mxu0 0.0
    %273 = vmatprep.subr.mxu0 0.0
    %274 = vmatpush2.msra.mxu0 0.0
    %275 = vmatprep.subr.mxu0 0.0
    %276 = vmatpush2.msra.mxu0 0.0
    %277 = vmatprep.subr.mxu0 0.0
    %278 = vmatpush2.msra.mxu0 0.0
    %279 = vmatprep.subr.mxu0 0.0
    %280 = vmatpush2.msra.mxu0 0.0
    %281 = vmatprep.subr.mxu0 0.0
    %282 = vmatpush2.msra.mxu0 0.0
    %283 = vmatprep.subr.mxu0 0.0
    %284 = vmatpush2.msra.mxu0 0.0
    %285 = vmatprep.subr.mxu0 0.0
    %286 = vmatpush2.msra.mxu0 0.0
    %287 = vmatprep.subr.mxu0 0.0
    %288 = vmatpush2.msra.mxu0 0.0
    %289 = vmatprep.subr.mxu0 0.0
    %290 = vmatpush2.msra.mxu0 0.0
    %291 = vmatprep.subr.mxu0 0.0
    %292 = vmatpush2.msra.mxu0 0.0
    %293 = vmatprep.subr.mxu0 0.0
    %294 = vmatpush2.msra.mxu0 0.0
    %295 = vmatprep.subr.mxu0 0.0
    %296 = vmatpush2.msra.mxu0 0.0
    %297 = vmatprep.mubr.f32.mxu0 0.0
    %298 = vmatmul.mubr.f32.gmra.mxu0 %v211
    %v299 = vpop.f32.mrf.mxu0
    %v300 = vadd.f32 %v232, %v299
    %v301 = vpop.f32.mrf.mxu0
    %302 = vdwg.mxu0
    %303 = vadd.xlane.f32.xlu0 %v300
    %v304 = vpop.xlane.xlu0 %303
    %v305 = vmul.f32 %v304, 0.03125
    %v306 = vmul.f32 %v300, %v300
    %307 = vadd.xlane.f32.xlu0 %v306
    %v308 = vpop.xlane.xlu0 %307
    %v309 = vmul.f32 %v308, 0.03125
    %v310 = vmul.f32 %v305, %v305
    %v311 = vsub.f32 %v309, %v310
    %v312 = vmax.f32 %v311, 0.0
    %v313 = vadd.f32 %v312, 1e-05
    %v314 = vrsqrt.pop %v313
    %v315 = vsub.f32 %v300, %v305
    %v316 = vlaneseq
    %v317 = vshrl.u32 %v316, 7
    %v318 = vsub.s32 1, %v317
    %v319 = vrot.slane %v228, %v318
    %v320 = vmul.f32 %v314, %v319
    %v321 = vmul.f32 %v315, %v320
    %v322 = vlaneseq
    %v323 = vshrl.u32 %v322, 7
    %v324 = vsub.s32 2, %v323
    %v325 = vrot.slane %v228, %v324
    %v326 = vadd.f32 %v321, %v325
    %v327 = vmul.f32 %v326, 0.5
    %v328 = vmul.f32 %v326, 0.70710677
    %v329 = verf.f32.pop %v328
    %v330 = vadd.f32 %v329, 1.0
    %v331 = vmul.f32 %v327, %v330
    %v332 = vld [vmem:[#allocation10] sm:$0xff]
    %v333 = vld [vmem:[#allocation10 + $0x8] sm:$0xff]
    %v334 = vld [vmem:[#allocation10 + $0x10] sm:$0xff]
    %v335 = vld [vmem:[#allocation10 + $0x18] sm:$0xff]
    %v336 = vld [vmem:[#allocation10 + $0x20] sm:$0xff]
    %v337 = vld [vmem:[#allocation10 + $0x28] sm:$0xff]
    %v338 = vld [vmem:[#allocation10 + $0x30] sm:$0xff]
    %v339 = vld [vmem:[#allocation10 + $0x38] sm:$0xff]
    %v340 = vld [vmem:[#allocation10 + $0x40] sm:$0xff]
    %v341 = vld [vmem:[#allocation10 + $0x48] sm:$0xff]
    %v342 = vld [vmem:[#allocation10 + $0x50] sm:$0xff]
    %v343 = vld [vmem:[#allocation10 + $0x58] sm:$0xff]
    %v344 = vld [vmem:[#allocation10 + $0x60] sm:$0xff]
    %v345 = vld [vmem:[#allocation10 + $0x68] sm:$0xff]
    %v346 = vld [vmem:[#allocation10 + $0x70] sm:$0xff]
    %v347 = vld [vmem:[#allocation10 + $0x78] sm:$0xff]
    %v348 = vld [vmem:[%s6] sm:$0x1]
    %v350 = vlaneseq
    %v351 = vshrl.u32 %v350, 7
    %v352 = vsub.s32 0, %v351
    %v353 = vrot.slane %v348, %v352
    %355 = vmatprep.subr.mxu0 0.0
    %356 = vmatpush1.msra.mxu0 %v347
    %357 = vmatprep.subr.mxu0 0.0
    %358 = vmatpush1.msra.mxu0 %v346
    %359 = vmatprep.subr.mxu0 0.0
    %360 = vmatpush1.msra.mxu0 %v345
    %361 = vmatprep.subr.mxu0 0.0
    %362 = vmatpush1.msra.mxu0 %v344
    %363 = vmatprep.subr.mxu0 0.0
    %364 = vmatpush1.msra.mxu0 %v343
    %365 = vmatprep.subr.mxu0 0.0
    %366 = vmatpush1.msra.mxu0 %v342
    %367 = vmatprep.subr.mxu0 0.0
    %368 = vmatpush1.msra.mxu0 %v341
    %369 = vmatprep.subr.mxu0 0.0
    %370 = vmatpush1.msra.mxu0 %v340
    %371 = vmatprep.subr.mxu0 0.0
    %372 = vmatpush1.msra.mxu0 %v339
    %373 = vmatprep.subr.mxu0 0.0
    %374 = vmatpush1.msra.mxu0 %v338
    %375 = vmatprep.subr.mxu0 0.0
    %376 = vmatpush1.msra.mxu0 %v337
    %377 = vmatprep.subr.mxu0 0.0
    %378 = vmatpush1.msra.mxu0 %v336
    %379 = vmatprep.subr.mxu0 0.0
    %380 = vmatpush1.msra.mxu0 %v335
    %381 = vmatprep.subr.mxu0 0.0
    %382 = vmatpush1.msra.mxu0 %v334
    %383 = vmatprep.subr.mxu0 0.0
    %384 = vmatpush1.msra.mxu0 %v333
    %385 = vmatprep.subr.mxu0 0.0
    %386 = vmatpush1.msra.mxu0 %v332
    %387 = vmatprep.subr.mxu0 0.0
    %388 = vmatpush2.msra.mxu0 0.0
    %389 = vmatprep.subr.mxu0 0.0
    %390 = vmatpush2.msra.mxu0 0.0
    %391 = vmatprep.subr.mxu0 0.0
    %392 = vmatpush2.msra.mxu0 0.0
    %393 = vmatprep.subr.mxu0 0.0
    %394 = vmatpush2.msra.mxu0 0.0
    %395 = vmatprep.subr.mxu0 0.0
    %396 = vmatpush2.msra.mxu0 0.0
    %397 = vmatprep.subr.mxu0 0.0
    %398 = vmatpush2.msra.mxu0 0.0
    %399 = vmatprep.subr.mxu0 0.0
    %400 = vmatpush2.msra.mxu0 0.0
    %401 = vmatprep.subr.mxu0 0.0
    %402 = vmatpush2.msra.mxu0 0.0
    %403 = vmatprep.subr.mxu0 0.0
    %404 = vmatpush2.msra.mxu0 0.0
    %405 = vmatprep.subr.mxu0 0.0
    %406 = vmatpush2.msra.mxu0 0.0
    %407 = vmatprep.subr.mxu0 0.0
    %408 = vmatpush2.msra.mxu0 0.0
    %409 = vmatprep.subr.mxu0 0.0
    %410 = vmatpush2.msra.mxu0 0.0
    %411 = vmatprep.subr.mxu0 0.0
    %412 = vmatpush2.msra.mxu0 0.0
    %413 = vmatprep.subr.mxu0 0.0
    %414 = vmatpush2.msra.mxu0 0.0
    %415 = vmatprep.subr.mxu0 0.0
    %416 = vmatpush2.msra.mxu0 0.0
    %417 = vmatprep.subr.mxu0 0.0
    %418 = vmatpush2.msra.mxu0 0.0
    %419 = vmatprep.mubr.f32.mxu0 0.0
    %420 = vmatmul.mubr.f32.gmra.mxu0 %v331
    %v421 = vpop.f32.mrf.mxu0
    %v422 = vadd.f32 %v353, %v421
    %v423 = vpop.f32.mrf.mxu0
    %424 = vdwg.mxu0
    %425 = vst [vmem:[#allocation11] sm:$0xff] %v422
    // Predicated region
    $region50: #{tpu_custom_call.1} parent=1 // pred_check
      _
    $region51: #{tpu_custom_call.1} parent=1 // pred_check_branch
      %427 = sbr.rel (0) target = $region53
    $region52: #{tpu_custom_call.1} parent=1 // pred_region
      %s429 = ssub.s32 128, 128
      %430 = vsyncadd [#allocation4], %s429
      %s432 = sshll.u32 [#allocation11], 4
      %s433 = int_to_ptr.vmem [resolvable:$true] %s432
      %435 = dma.vmem_to_hbm [thread:$0]  %s433, 128, %s7, [#allocation4]
    $region53: #{tpu_custom_call.1} parent=1 // pred_fallthru
      _
    // Predicated region
    $region54: #{tpu_custom_call.1} parent=1 // pred_check
      _
    $region55: #{tpu_custom_call.1} parent=1 // pred_check_branch
      %437 = sbr.rel (0) target = $region57
    $region56: #{tpu_custom_call.1} parent=1 // pred_region
      %438 = dma.done [#allocation4], 128
    $region57: #{tpu_custom_call.1} parent=1 // pred_fallthru
      _
    %439 = vsyncpa [#allocation3], 1
    %440 = vsyncpa [#allocation6], 1
    %441 = vsyncpa [#allocation9], 1
    %442 = vsyncpa [#allocation4], 1

// kernel: tpu_custom_call.1
$region0: #{tpu_custom_call.1}
  #allocation0 [shape = 'u32[]', space=smem, size = 0x4, offset = 0x4, fixed_abs, tag = 'smem constant byte address 0x4 - core index']
  #allocation1 [shape = 'u32[144,128]{1,0:T(1,128)}', space=vmem, size = 0x12000, scoped, tag = 'internal scratch']
  %s0 = inlined_call_operand.hbm [shape: f32[8,128], index: 0, kind: input, shape index: {}]
  %s1 = inlined_call_operand.hbm [shape: f32[128,128], index: 1, kind: input, shape index: {}]
  %s2 = inlined_call_operand.hbm [shape: f32[3,128], index: 2, kind: input, shape index: {}]
  %s3 = inlined_call_operand.hbm [shape: f32[128,128], index: 3, kind: input, shape index: {}]
  %s4 = inlined_call_operand.vmem [shape: f32[3,128], index: 4, kind: input, shape index: {}]
  %s5 = inlined_call_operand.hbm [shape: f32[128,128], index: 5, kind: input, shape index: {}]
  %s6 = inlined_call_operand.vmem [shape: f32[1,128], index: 6, kind: input, shape index: {}]
  %s7 = inlined_call_operand.hbm [shape: f32[8,128], index: 7, kind: output, shape index: {}]
  %s8 = sld [smem:[#allocation0]]
  $region58: #{tpu_custom_call.1} parent=0
    _
  %s10 = ssub.s32 1, %s8
  %s11 = scalar_select 0, %s10, %s8
  $region1: #{tpu_custom_call.1} parent=0
    #allocation2 [shape = 'u8[4096]{0}', space=vmem, size = 0x1000, scoped, tag = 'input window, operand 0, single buffered']
    #allocation3 [shape = 's32[1]{0}', space=sflag, size = 0x4, scoped, tag = 'scoped memory for tpu_custom_call.1']
    #allocation4 [shape = 's32[1]{0}', space=sflag, size = 0x4, scoped, tag = 'scoped memory for tpu_custom_call.1']
    #allocation5 [shape = 'u8[65536]{0}', space=vmem, size = 0x10000, scoped, tag = 'input window, operand 1, single buffered']
    #allocation6 [shape = 's32[1]{0}', space=sflag, size = 0x4, scoped, tag = 'scoped memory for tpu_custom_call.1']
    #allocation7 [shape = 'u8[2048]{0}', space=vmem, size = 0x800, scoped, tag = 'input window, operand 2, single buffered']
    #allocation8 [shape = 'u8[65536]{0}', space=vmem, size = 0x10000, scoped, tag = 'input window, operand 3, single buffered']
    #allocation9 [shape = 's32[1]{0}', space=sflag, size = 0x4, scoped, tag = 'scoped memory for tpu_custom_call.1']
    #allocation10 [shape = 'u8[65536]{0}', space=vmem, size = 0x10000, scoped, tag = 'input window, operand 5, single buffered']
    #allocation11 [shape = 'u8[4096]{0}', space=vmem, size = 0x1000, scoped, tag = 'output window, operand 0, single buffered']
    %12 = vsyncpa [#allocation3], 0
    %13 = vsyncpa [#allocation6], 0
    %14 = vsyncpa [#allocation9], 0
    %15 = vsyncpa [#allocation4], 0
    // Predicated region
    $region2: #{tpu_custom_call.1} parent=1 // pred_check
      _
    $region3: #{tpu_custom_call.1} parent=1 // pred_check_branch
      %17 = sbr.rel (0) target = $region5
    $region4: #{tpu_custom_call.1} parent=1 // pred_region
      %s19 = ssub.s32 128, 128
      %20 = vsyncadd [#allocation3], %s19
      %s22 = sshll.u32 [#allocation2], 4
      %s23 = int_to_ptr.vmem [resolvable:$true] %s22
      %25 = dma.hbm_to_vmem [thread:$0]  %s0, 128, %s23, [#allocation3]
    $region5: #{tpu_custom_call.1} parent=1 // pred_fallthru
      _
    // Predicated region
    $region6: #{tpu_custom_call.1} parent=1 // pred_check
      _
    $region7: #{tpu_custom_call.1} parent=1 // pred_check_branch
      %27 = sbr.rel (0) target = $region9
    $region8: #{tpu_custom_call.1} parent=1 // pred_region
      %s29 = ssub.s32 2048, 2048
      %30 = vsyncadd [#allocation6], %s29
      %s31 = sshll.u32 [#allocation5], 4
      %s32 = int_to_ptr.vmem [resolvable:$true] %s31
      %37 = dma.hbm_to_vmem [thread:$0]  %s1, 2048, %s32, [#allocation6], 128, 128, 8
    $region9: #{tpu_custom_call.1} parent=1 // pred_fallthru
      _
    // Predicated region
    $region10: #{tpu_custom_call.1} parent=1 // pred_check
      _
    $region11: #{tpu_custom_call.1} parent=1 // pred_check_branch
      %39 = sbr.rel (0) target = $region13
    $region12: #{tpu_custom_call.1} parent=1 // pred_region
      %s41 = ssub.s32 64, 64
      %42 = vsyncadd [#allocation6], %s41
      %s44 = sshll.u32 [#allocation7], 4
      %s45 = int_to_ptr.vmem [resolvable:$true] %s44
      %47 = dma.hbm_to_vmem [thread:$0]  %s2, 64, %s45, [#allocation6]
    $region13: #{tpu_custom_call.1} parent=1 // pred_fallthru
      _
    // Predicated region
    $region14: #{tpu_custom_call.1} parent=1 // pred_check
      _
    $region15: #{tpu_custom_call.1} parent=1 // pred_check_branch
      %49 = sbr.rel (0) target = $region17
    $region16: #{tpu_custom_call.1} parent=1 // pred_region
      %s51 = ssub.s32 2048, 2048
      %52 = vsyncadd [#allocation9], %s51
      %s53 = sshll.u32 [#allocation8], 4
      %s54 = int_to_ptr.vmem [resolvable:$true] %s53
      %59 = dma.hbm_to_vmem [thread:$0]  %s3, 2048, %s54, [#allocation9], 128, 128, 8
    $region17: #{tpu_custom_call.1} parent=1 // pred_fallthru
      _
    // Predicated region
    $region18: #{tpu_custom_call.1} parent=1 // pred_check
      _
    $region19: #{tpu_custom_call.1} parent=1 // pred_check_branch
      %61 = sbr.rel (0) target = $region21
    $region20: #{tpu_custom_call.1} parent=1 // pred_region
      _
    $region21: #{tpu_custom_call.1} parent=1 // pred_fallthru
      _
    // Predicated region
    $region22: #{tpu_custom_call.1} parent=1 // pred_check
      _
    $region23: #{tpu_custom_call.1} parent=1 // pred_check_branch
      %63 = sbr.rel (0) target = $region25
    $region24: #{tpu_custom_call.1} parent=1 // pred_region
      %s65 = ssub.s32 2048, 2048
      %66 = vsyncadd [#allocation9], %s65
      %s67 = sshll.u32 [#allocation10], 4
      %s68 = int_to_ptr.vmem [resolvable:$true] %s67
      %73 = dma.hbm_to_vmem [thread:$0]  %s5, 2048, %s68, [#allocation9], 128, 128, 8
    $region25: #{tpu_custom_call.1} parent=1 // pred_fallthru
      _
    // Predicated region
    $region26: #{tpu_custom_call.1} parent=1 // pred_check
      _
    $region27: #{tpu_custom_call.1} parent=1 // pred_check_branch
      %75 = sbr.rel (0) target = $region29
    $region28: #{tpu_custom_call.1} parent=1 // pred_region
      _
    $region29: #{tpu_custom_call.1} parent=1 // pred_fallthru
      _
    // Predicated region
    $region30: #{tpu_custom_call.1} parent=1 // pred_check
      _
    $region31: #{tpu_custom_call.1} parent=1 // pred_check_branch
      %77 = sbr.rel (0) target = $region33
    $region32: #{tpu_custom_call.1} parent=1 // pred_region
      %78 = dma.done [#allocation3], 128
    $region33: #{tpu_custom_call.1} parent=1 // pred_fallthru
      _
    // Predicated region
    $region34: #{tpu_custom_call.1} parent=1 // pred_check
      _
    $region35: #{tpu_custom_call.1} parent=1 // pred_check_branch
      %80 = sbr.rel (0) target = $region37
    $region36: #{tpu_custom_call.1} parent=1 // pred_region
      %81 = dma.done [#allocation6], 2048
    $region37: #{tpu_custom_call.1} parent=1 // pred_fallthru
      _
    // Predicated region
    $region38: #{tpu_custom_call.1} parent=1 // pred_check
      _
    $region39: #{tpu_custom_call.1} parent=1 // pred_check_branch
      %83 = sbr.rel (0) target = $region41
    $region40: #{tpu_custom_call.1} parent=1 // pred_region
      %84 = dma.done [#allocation6], 64
    $region41: #{tpu_custom_call.1} parent=1 // pred_fallthru
      _
    // Predicated region
    $region42: #{tpu_custom_call.1} parent=1 // pred_check
      _
    $region43: #{tpu_custom_call.1} parent=1 // pred_check_branch
      %86 = sbr.rel (0) target = $region45
    $region44: #{tpu_custom_call.1} parent=1 // pred_region
      %87 = dma.done [#allocation9], 2048
    $region45: #{tpu_custom_call.1} parent=1 // pred_fallthru
      _
    // Predicated region
    $region46: #{tpu_custom_call.1} parent=1 // pred_check
      _
    $region47: #{tpu_custom_call.1} parent=1 // pred_check_branch
      %89 = sbr.rel (0) target = $region49
    $region48: #{tpu_custom_call.1} parent=1 // pred_region
      %90 = dma.done [#allocation9], 2048
    $region49: #{tpu_custom_call.1} parent=1 // pred_fallthru
      _
    %v91 = vld [vmem:[#allocation2] sm:$0xff]
    %v92 = vld [vmem:[#allocation5] sm:$0xff]
    %v93 = vld [vmem:[#allocation5 + $0x8] sm:$0xff]
    %v94 = vld [vmem:[#allocation5 + $0x10] sm:$0xff]
    %v95 = vld [vmem:[#allocation5 + $0x18] sm:$0xff]
    %v96 = vld [vmem:[#allocation5 + $0x20] sm:$0xff]
    %v97 = vld [vmem:[#allocation5 + $0x28] sm:$0xff]
    %v98 = vld [vmem:[#allocation5 + $0x30] sm:$0xff]
    %v99 = vld [vmem:[#allocation5 + $0x38] sm:$0xff]
    %v100 = vld [vmem:[#allocation5 + $0x40] sm:$0xff]
    %v101 = vld [vmem:[#allocation5 + $0x48] sm:$0xff]
    %v102 = vld [vmem:[#allocation5 + $0x50] sm:$0xff]
    %v103 = vld [vmem:[#allocation5 + $0x58] sm:$0xff]
    %v104 = vld [vmem:[#allocation5 + $0x60] sm:$0xff]
    %v105 = vld [vmem:[#allocation5 + $0x68] sm:$0xff]
    %v106 = vld [vmem:[#allocation5 + $0x70] sm:$0xff]
    %v107 = vld [vmem:[#allocation5 + $0x78] sm:$0xff]
    %v108 = vld [vmem:[#allocation7] sm:$0x7]
    %v109 = vlaneseq
    %v110 = vshrl.u32 %v109, 7
    %v111 = vsub.s32 0, %v110
    %v112 = vrot.slane %v108, %v111
    %113 = vmatprep.subr.mxu0 0.0
    %114 = vmatpush1.msra.mxu0 %v107
    %115 = vmatprep.subr.mxu0 0.0
    %116 = vmatpush1.msra.mxu0 %v106
    %117 = vmatprep.subr.mxu0 0.0
    %118 = vmatpush1.msra.mxu0 %v105
    %119 = vmatprep.subr.mxu0 0.0
    %120 = vmatpush1.msra.mxu0 %v104
    %121 = vmatprep.subr.mxu0 0.0
    %122 = vmatpush1.msra.mxu0 %v103
    %123 = vmatprep.subr.mxu0 0.0
    %124 = vmatpush1.msra.mxu0 %v102
    %125 = vmatprep.subr.mxu0 0.0
    %126 = vmatpush1.msra.mxu0 %v101
    %127 = vmatprep.subr.mxu0 0.0
    %128 = vmatpush1.msra.mxu0 %v100
    %129 = vmatprep.subr.mxu0 0.0
    %130 = vmatpush1.msra.mxu0 %v99
    %131 = vmatprep.subr.mxu0 0.0
    %132 = vmatpush1.msra.mxu0 %v98
    %133 = vmatprep.subr.mxu0 0.0
    %134 = vmatpush1.msra.mxu0 %v97
    %135 = vmatprep.subr.mxu0 0.0
    %136 = vmatpush1.msra.mxu0 %v96
    %137 = vmatprep.subr.mxu0 0.0
    %138 = vmatpush1.msra.mxu0 %v95
    %139 = vmatprep.subr.mxu0 0.0
    %140 = vmatpush1.msra.mxu0 %v94
    %141 = vmatprep.subr.mxu0 0.0
    %142 = vmatpush1.msra.mxu0 %v93
    %143 = vmatprep.subr.mxu0 0.0
    %144 = vmatpush1.msra.mxu0 %v92
    %145 = vmatprep.subr.mxu0 0.0
    %146 = vmatpush2.msra.mxu0 0.0
    %147 = vmatprep.subr.mxu0 0.0
    %148 = vmatpush2.msra.mxu0 0.0
    %149 = vmatprep.subr.mxu0 0.0
    %150 = vmatpush2.msra.mxu0 0.0
    %151 = vmatprep.subr.mxu0 0.0
    %152 = vmatpush2.msra.mxu0 0.0
    %153 = vmatprep.subr.mxu0 0.0
    %154 = vmatpush2.msra.mxu0 0.0
    %155 = vmatprep.subr.mxu0 0.0
    %156 = vmatpush2.msra.mxu0 0.0
    %157 = vmatprep.subr.mxu0 0.0
    %158 = vmatpush2.msra.mxu0 0.0
    %159 = vmatprep.subr.mxu0 0.0
    %160 = vmatpush2.msra.mxu0 0.0
    %161 = vmatprep.subr.mxu0 0.0
    %162 = vmatpush2.msra.mxu0 0.0
    %163 = vmatprep.subr.mxu0 0.0
    %164 = vmatpush2.msra.mxu0 0.0
    %165 = vmatprep.subr.mxu0 0.0
    %166 = vmatpush2.msra.mxu0 0.0
    %167 = vmatprep.subr.mxu0 0.0
    %168 = vmatpush2.msra.mxu0 0.0
    %169 = vmatprep.subr.mxu0 0.0
    %170 = vmatpush2.msra.mxu0 0.0
    %171 = vmatprep.subr.mxu0 0.0
    %172 = vmatpush2.msra.mxu0 0.0
    %173 = vmatprep.subr.mxu0 0.0
    %174 = vmatpush2.msra.mxu0 0.0
    %175 = vmatprep.subr.mxu0 0.0
    %176 = vmatpush2.msra.mxu0 0.0
    %177 = vmatprep.mubr.f32.mxu0 0.0
    %178 = vmatmul.mubr.f32.gmra.mxu0 %v91
    %v179 = vpop.f32.mrf.mxu0
    %v180 = vadd.f32 %v112, %v179
    %v181 = vpop.f32.mrf.mxu0
    %182 = vdwg.mxu0
    %183 = vadd.xlane.f32.xlu0 %v180
    %v184 = vpop.xlane.xlu0 %183
    %v185 = vmul.f32 %v184, 0.015625
    %v186 = vmul.f32 %v180, %v180
    %187 = vadd.xlane.f32.xlu0 %v186
    %v188 = vpop.xlane.xlu0 %187
    %v189 = vmul.f32 %v188, 0.015625
    %v190 = vmul.f32 %v185, %v185
    %v191 = vsub.f32 %v189, %v190
    %v192 = vmax.f32 %v191, 0.0
    %v193 = vadd.f32 %v192, 1e-05
    %v194 = vrsqrt.pop %v193
    %v195 = vsub.f32 %v180, %v185
    %v196 = vlaneseq
    %v197 = vshrl.u32 %v196, 7
    %v198 = vsub.s32 1, %v197
    %v199 = vrot.slane %v108, %v198
    %v200 = vmul.f32 %v194, %v199
    %v201 = vmul.f32 %v195, %v200
    %v202 = vlaneseq
    %v203 = vshrl.u32 %v202, 7
    %v204 = vsub.s32 2, %v203
    %v205 = vrot.slane %v108, %v204
    %v206 = vadd.f32 %v201, %v205
    %v207 = vmul.f32 %v206, 0.5
    %v208 = vmul.f32 %v206, 0.70710677
    %v209 = verf.f32.pop %v208
    %v210 = vadd.f32 %v209, 1.0
    %v211 = vmul.f32 %v207, %v210
    %v212 = vld [vmem:[#allocation8] sm:$0xff]
    %v213 = vld [vmem:[#allocation8 + $0x8] sm:$0xff]
    %v214 = vld [vmem:[#allocation8 + $0x10] sm:$0xff]
    %v215 = vld [vmem:[#allocation8 + $0x18] sm:$0xff]
    %v216 = vld [vmem:[#allocation8 + $0x20] sm:$0xff]
    %v217 = vld [vmem:[#allocation8 + $0x28] sm:$0xff]
    %v218 = vld [vmem:[#allocation8 + $0x30] sm:$0xff]
    %v219 = vld [vmem:[#allocation8 + $0x38] sm:$0xff]
    %v220 = vld [vmem:[#allocation8 + $0x40] sm:$0xff]
    %v221 = vld [vmem:[#allocation8 + $0x48] sm:$0xff]
    %v222 = vld [vmem:[#allocation8 + $0x50] sm:$0xff]
    %v223 = vld [vmem:[#allocation8 + $0x58] sm:$0xff]
    %v224 = vld [vmem:[#allocation8 + $0x60] sm:$0xff]
    %v225 = vld [vmem:[#allocation8 + $0x68] sm:$0xff]
    %v226 = vld [vmem:[#allocation8 + $0x70] sm:$0xff]
    %v227 = vld [vmem:[#allocation8 + $0x78] sm:$0xff]
    %v228 = vld [vmem:[%s4] sm:$0x7]
    %v229 = vlaneseq
    %v230 = vshrl.u32 %v229, 7
    %v231 = vsub.s32 0, %v230
    %v232 = vrot.slane %v228, %v231
    %233 = vmatprep.subr.mxu0 0.0
    %234 = vmatpush1.msra.mxu0 %v227
    %235 = vmatprep.subr.mxu0 0.0
    %236 = vmatpush1.msra.mxu0 %v226
    %237 = vmatprep.subr.mxu0 0.0
    %238 = vmatpush1.msra.mxu0 %v225
    %239 = vmatprep.subr.mxu0 0.0
    %240 = vmatpush1.msra.mxu0 %v224
    %241 = vmatprep.subr.mxu0 0.0
    %242 = vmatpush1.msra.mxu0 %v223
    %243 = vmatprep.subr.mxu0 0.0
    %244 = vmatpush1.msra.mxu0 %v222
    %245 = vmatprep.subr.mxu0 0.0
    %246 = vmatpush1.msra.mxu0 %v221
    %247 = vmatprep.subr.mxu0 0.0
    %248 = vmatpush1.msra.mxu0 %v220
    %249 = vmatprep.subr.mxu0 0.0
    %250 = vmatpush1.msra.mxu0 %v219
    %251 = vmatprep.subr.mxu0 0.0
    %252 = vmatpush1.msra.mxu0 %v218
    %253 = vmatprep.subr.mxu0 0.0
    %254 = vmatpush1.msra.mxu0 %v217
    %255 = vmatprep.subr.mxu0 0.0
    %256 = vmatpush1.msra.mxu0 %v216
    %257 = vmatprep.subr.mxu0 0.0
    %258 = vmatpush1.msra.mxu0 %v215
    %259 = vmatprep.subr.mxu0 0.0
    %260 = vmatpush1.msra.mxu0 %v214
    %261 = vmatprep.subr.mxu0 0.0
    %262 = vmatpush1.msra.mxu0 %v213
    %263 = vmatprep.subr.mxu0 0.0
    %264 = vmatpush1.msra.mxu0 %v212
    %265 = vmatprep.subr.mxu0 0.0
    %266 = vmatpush2.msra.mxu0 0.0
    %267 = vmatprep.subr.mxu0 0.0
    %268 = vmatpush2.msra.mxu0 0.0
    %269 = vmatprep.subr.mxu0 0.0
    %270 = vmatpush2.msra.mxu0 0.0
    %271 = vmatprep.subr.mxu0 0.0
    %272 = vmatpush2.msra.mxu0 0.0
    %273 = vmatprep.subr.mxu0 0.0
    %274 = vmatpush2.msra.mxu0 0.0
    %275 = vmatprep.subr.mxu0 0.0
    %276 = vmatpush2.msra.mxu0 0.0
    %277 = vmatprep.subr.mxu0 0.0
    %278 = vmatpush2.msra.mxu0 0.0
    %279 = vmatprep.subr.mxu0 0.0
    %280 = vmatpush2.msra.mxu0 0.0
    %281 = vmatprep.subr.mxu0 0.0
    %282 = vmatpush2.msra.mxu0 0.0
    %283 = vmatprep.subr.mxu0 0.0
    %284 = vmatpush2.msra.mxu0 0.0
    %285 = vmatprep.subr.mxu0 0.0
    %286 = vmatpush2.msra.mxu0 0.0
    %287 = vmatprep.subr.mxu0 0.0
    %288 = vmatpush2.msra.mxu0 0.0
    %289 = vmatprep.subr.mxu0 0.0
    %290 = vmatpush2.msra.mxu0 0.0
    %291 = vmatprep.subr.mxu0 0.0
    %292 = vmatpush2.msra.mxu0 0.0
    %293 = vmatprep.subr.mxu0 0.0
    %294 = vmatpush2.msra.mxu0 0.0
    %295 = vmatprep.subr.mxu0 0.0
    %296 = vmatpush2.msra.mxu0 0.0
    %297 = vmatprep.mubr.f32.mxu0 0.0
    %298 = vmatmul.mubr.f32.gmra.mxu0 %v211
    %v299 = vpop.f32.mrf.mxu0
    %v300 = vadd.f32 %v232, %v299
    %v301 = vpop.f32.mrf.mxu0
    %302 = vdwg.mxu0
    %303 = vadd.xlane.f32.xlu0 %v300
    %v304 = vpop.xlane.xlu0 %303
    %v305 = vmul.f32 %v304, 0.03125
    %v306 = vmul.f32 %v300, %v300
    %307 = vadd.xlane.f32.xlu0 %v306
    %v308 = vpop.xlane.xlu0 %307
    %v309 = vmul.f32 %v308, 0.03125
    %v310 = vmul.f32 %v305, %v305
    %v311 = vsub.f32 %v309, %v310
    %v312 = vmax.f32 %v311, 0.0
    %v313 = vadd.f32 %v312, 1e-05
    %v314 = vrsqrt.pop %v313
    %v315 = vsub.f32 %v300, %v305
    %v316 = vlaneseq
    %v317 = vshrl.u32 %v316, 7
    %v318 = vsub.s32 1, %v317
    %v319 = vrot.slane %v228, %v318
    %v320 = vmul.f32 %v314, %v319
    %v321 = vmul.f32 %v315, %v320
    %v322 = vlaneseq
    %v323 = vshrl.u32 %v322, 7
    %v324 = vsub.s32 2, %v323
    %v325 = vrot.slane %v228, %v324
    %v326 = vadd.f32 %v321, %v325
    %v327 = vmul.f32 %v326, 0.5
    %v328 = vmul.f32 %v326, 0.70710677
    %v329 = verf.f32.pop %v328
    %v330 = vadd.f32 %v329, 1.0
    %v331 = vmul.f32 %v327, %v330
    %v332 = vld [vmem:[#allocation10] sm:$0xff]
    %v333 = vld [vmem:[#allocation10 + $0x8] sm:$0xff]
    %v334 = vld [vmem:[#allocation10 + $0x10] sm:$0xff]
    %v335 = vld [vmem:[#allocation10 + $0x18] sm:$0xff]
    %v336 = vld [vmem:[#allocation10 + $0x20] sm:$0xff]
    %v337 = vld [vmem:[#allocation10 + $0x28] sm:$0xff]
    %v338 = vld [vmem:[#allocation10 + $0x30] sm:$0xff]
    %v339 = vld [vmem:[#allocation10 + $0x38] sm:$0xff]
    %v340 = vld [vmem:[#allocation10 + $0x40] sm:$0xff]
    %v341 = vld [vmem:[#allocation10 + $0x48] sm:$0xff]
    %v342 = vld [vmem:[#allocation10 + $0x50] sm:$0xff]
    %v343 = vld [vmem:[#allocation10 + $0x58] sm:$0xff]
    %v344 = vld [vmem:[#allocation10 + $0x60] sm:$0xff]
    %v345 = vld [vmem:[#allocation10 + $0x68] sm:$0xff]
    %v346 = vld [vmem:[#allocation10 + $0x70] sm:$0xff]
    %v347 = vld [vmem:[#allocation10 + $0x78] sm:$0xff]
    %v348 = vld [vmem:[%s6] sm:$0x1]
    %v350 = vlaneseq
    %v351 = vshrl.u32 %v350, 7
    %v352 = vsub.s32 0, %v351
    %v353 = vrot.slane %v348, %v352
    %355 = vmatprep.subr.mxu0 0.0
    %356 = vmatpush1.msra.mxu0 %v347
    %357 = vmatprep.subr.mxu0 0.0
    %358 = vmatpush1.msra.mxu0 %v346
    %359 = vmatprep.subr.mxu0 0.0
    %360 = vmatpush1.msra.mxu0 %v345
    %361 = vmatprep.subr.mxu0 0.0
    %362 = vmatpush1.msra.mxu0 %v344
    %363 = vmatprep.subr.mxu0 0.0
    %364 = vmatpush1.msra.mxu0 %v343
    %365 = vmatprep.subr.mxu0 0.0
    %366 = vmatpush1.msra.mxu0 %v342
    %367 = vmatprep.subr.mxu0 0.0
    %368 = vmatpush1.msra.mxu0 %v341
    %369 = vmatprep.subr.mxu0 0.0
    %370 = vmatpush1.msra.mxu0 %v340
    %371 = vmatprep.subr.mxu0 0.0
    %372 = vmatpush1.msra.mxu0 %v339
    %373 = vmatprep.subr.mxu0 0.0
    %374 = vmatpush1.msra.mxu0 %v338
    %375 = vmatprep.subr.mxu0 0.0
    %376 = vmatpush1.msra.mxu0 %v337
    %377 = vmatprep.subr.mxu0 0.0
    %378 = vmatpush1.msra.mxu0 %v336
    %379 = vmatprep.subr.mxu0 0.0
    %380 = vmatpush1.msra.mxu0 %v335
    %381 = vmatprep.subr.mxu0 0.0
    %382 = vmatpush1.msra.mxu0 %v334
    %383 = vmatprep.subr.mxu0 0.0
    %384 = vmatpush1.msra.mxu0 %v333
    %385 = vmatprep.subr.mxu0 0.0
    %386 = vmatpush1.msra.mxu0 %v332
    %387 = vmatprep.subr.mxu0 0.0
    %388 = vmatpush2.msra.mxu0 0.0
    %389 = vmatprep.subr.mxu0 0.0
    %390 = vmatpush2.msra.mxu0 0.0
    %391 = vmatprep.subr.mxu0 0.0
    %392 = vmatpush2.msra.mxu0 0.0
    %393 = vmatprep.subr.mxu0 0.0
    %394 = vmatpush2.msra.mxu0 0.0
    %395 = vmatprep.subr.mxu0 0.0
    %396 = vmatpush2.msra.mxu0 0.0
    %397 = vmatprep.subr.mxu0 0.0
    %398 = vmatpush2.msra.mxu0 0.0
    %399 = vmatprep.subr.mxu0 0.0
    %400 = vmatpush2.msra.mxu0 0.0
    %401 = vmatprep.subr.mxu0 0.0
    %402 = vmatpush2.msra.mxu0 0.0
    %403 = vmatprep.subr.mxu0 0.0
    %404 = vmatpush2.msra.mxu0 0.0
    %405 = vmatprep.subr.mxu0 0.0
    %406 = vmatpush2.msra.mxu0 0.0
    %407 = vmatprep.subr.mxu0 0.0
    %408 = vmatpush2.msra.mxu0 0.0
    %409 = vmatprep.subr.mxu0 0.0
    %410 = vmatpush2.msra.mxu0 0.0
    %411 = vmatprep.subr.mxu0 0.0
    %412 = vmatpush2.msra.mxu0 0.0
    %413 = vmatprep.subr.mxu0 0.0
    %414 = vmatpush2.msra.mxu0 0.0
    %415 = vmatprep.subr.mxu0 0.0
    %416 = vmatpush2.msra.mxu0 0.0
    %417 = vmatprep.subr.mxu0 0.0
    %418 = vmatpush2.msra.mxu0 0.0
    %419 = vmatprep.mubr.f32.mxu0 0.0
    %420 = vmatmul.mubr.f32.gmra.mxu0 %v331
    %v421 = vpop.f32.mrf.mxu0
    %v422 = vadd.f32 %v353, %v421
    %v423 = vpop.f32.mrf.mxu0
    %424 = vdwg.mxu0
    %425 = vst [vmem:[#allocation11] sm:$0xff] %v422
    // Predicated region
    $region50: #{tpu_custom_call.1} parent=1 // pred_check
      _
    $region51: #{tpu_custom_call.1} parent=1 // pred_check_branch
      %427 = sbr.rel (0) target = $region53
    $region52: #{tpu_custom_call.1} parent=1 // pred_region
      %s429 = ssub.s32 128, 128
      %430 = vsyncadd [#allocation4], %s429
      %s432 = sshll.u32 [#allocation11], 4
      %s433 = int_to_ptr.vmem [resolvable:$true] %s432
      %435 = dma.vmem_to_hbm [thread:$0]  %s433, 128, %s7, [#allocation4]
    $region53: #{tpu_custom_call.1} parent=1 // pred_fallthru
      _
    // Predicated region
    $region54: #{tpu_custom_call.1} parent=1 // pred_check
      _
    $region55: #{tpu_custom_call.1} parent=1 // pred_check_branch
      %437 = sbr.rel (0) target = $region57
    $region56: #{tpu_custom_call.1} parent=1 // pred_region
      %438 = dma.done [#allocation4], 128
    $region57: #{tpu_custom_call.1} parent=1 // pred_fallthru
      _
    %439 = vsyncpa [#allocation3], 1
    %440 = vsyncpa [#allocation6], 1
    %441 = vsyncpa [#allocation9], 1
    %442 = vsyncpa [#allocation4], 1

</llo_original>
